<compile_context>
chip_gen: v7x
topology: tpu7x:2x2x1
jax: 0.10.0
libtpu: 0.0.40
codegen_flags: <defaults>
</compile_context>

<pallas_src>
import functools

import jax
import jax.numpy as jnp
from jax import lax
from jax.experimental import pallas as pl
from jax.experimental.pallas import tpu as pltpu


def _mha_kernel(xq_ref, xkv_ref, wq_ref, wk_ref, wv_ref, o_ref, *, num_heads, block_q):
    # xq_ref : (1, block_q, C)  query rows of the current (batch, q-block)
    # xkv_ref: (1, T, C)        full sequence of the current batch (for K/V)
    # w*_ref : (C, N) with N = H*Hs; wq is pre-scaled by C**-0.5 in the wrapper
    # o_ref  : (1, block_q, N)  lane-dense output tile (heads concatenated)
    xq = xq_ref[0]     # (Bq, C)
    xkv = xkv_ref[0]   # (T, C)

    n = wq_ref.shape[1]
    hs = n // num_heads

    # Fused projections: one MXU matmul each, N = H*Hs.
    q = jnp.dot(xq, wq_ref[...], preferred_element_type=jnp.float32)    # (Bq, N)
    k = jnp.dot(xkv, wk_ref[...], preferred_element_type=jnp.float32)   # (T, N)
    v = jnp.dot(xkv, wv_ref[...], preferred_element_type=jnp.float32)   # (T, N)

    bq = q.shape[0]
    kt = k.shape[0]

    # Split heads and move the head axis to the front (batch dim for the MXU).
    qh = jnp.swapaxes(q.reshape(bq, num_heads, hs), 0, 1)   # (H, Bq, Hs)
    kh = jnp.swapaxes(k.reshape(kt, num_heads, hs), 0, 1)   # (H, T, Hs)
    vh = jnp.swapaxes(v.reshape(kt, num_heads, hs), 0, 1)   # (H, T, Hs)

    # Scores: contract the last dims directly (no explicit k transpose).
    s = jnp.einsum("hqd,hkd->hqk", qh, kh,
                   preferred_element_type=jnp.float32)       # (H, Bq, T)

    # Causal mask using global query offsets for this query block.
    q_off = pl.program_id(1) * block_q
    row = q_off + lax.broadcasted_iota(jnp.int32, (bq, kt), 0)
    col = lax.broadcasted_iota(jnp.int32, (bq, kt), 1)
    mask = col <= row                                        # (Bq, T)
    s = jnp.where(mask[None, :, :], s, -jnp.inf)

    # Softmax along the key axis (f32).
    m = jnp.max(s, axis=-1, keepdims=True)
    p = jnp.exp(s - m)
    denom = jnp.sum(p, axis=-1, keepdims=True)
    attn = p * pl.reciprocal(denom, approx=True)

    # Weighted values, then concatenate heads back on the lane axis.
    out = jnp.einsum("hqk,hkd->hqd", attn, vh,
                     preferred_element_type=jnp.float32)      # (H, Bq, Hs)
    out = jnp.swapaxes(out, 0, 1).reshape(bq, n)              # (Bq, H*Hs)
    o_ref[0] = out.astype(o_ref.dtype)


def multi_head_attention(x, wq, wk, wv, *, max_block_q=128):
    """x: (B, T, C); wq/wk/wv: (H, C, Hs) (pre-transposed). Returns (B, T, H*Hs)."""
    B, T, C = x.shape
    H, _, Hs = wq.shape
    N = H * Hs

    # Fuse heads: (H, C, Hs) -> (C, H*Hs); column block h*Hs:(h+1)*Hs == head h,
    # matching torch.cat([head(x) for head in heads], dim=-1).
    def fuse(w):
        return jnp.transpose(w, (1, 0, 2)).reshape(C, N)

    wq_f = fuse(wq) * (C ** -0.5)   # fold the 1/sqrt(C) score scale into Wq
    wk_f = fuse(wk)
    wv_f = fuse(wv)

    # Query tiling: keep the live score slab at (block_q, T).
    block_q = T if T <= max_block_q else max_block_q
    if T % block_q:
        block_q = T                 # fall back to one query block if it doesn't divide
    nq = T // block_q

    kernel = functools.partial(_mha_kernel, num_heads=H, block_q=block_q)

    out = pl.pallas_call(
        kernel,
        out_shape=jax.ShapeDtypeStruct((B, T, N), x.dtype),
        grid_spec=pltpu.PrefetchScalarGridSpec(
            num_scalar_prefetch=0,
            grid=(B, nq),
            in_specs=[
                # query rows for this (b, qi) block
                pl.BlockSpec((1, block_q, C), lambda b, qi: (b, qi, 0)),
                # full sequence for K/V of this batch element
                pl.BlockSpec((1, T, C), lambda b, qi: (b, 0, 0)),
                # fused projection weights: constant index -> fetched once, stay resident
                pl.BlockSpec((C, N), lambda b, qi: (0, 0)),
                pl.BlockSpec((C, N), lambda b, qi: (0, 0)),
                pl.BlockSpec((C, N), lambda b, qi: (0, 0)),
            ],
            # lane-dense output: last dim is H*Hs, heads already concatenated
            out_specs=pl.BlockSpec((1, block_q, N), lambda b, qi: (b, qi, 0)),
        ),
        compiler_params=pltpu.CompilerParams(
            dimension_semantics=("parallel", "parallel"),
            vmem_limit_bytes=48 * 1024 * 1024,  # explicit budget (safe on v5e/v6e/v7x)
        ),
    )(x, x, wq_f, wk_f, wv_f)
    return out


def _reference(x, wq, wk, wv):
    """Pure-JAX reference mirroring the PyTorch MultiHeadAttention module."""
    B, T, C = x.shape
    H, _, Hs = wq.shape
    outs = []
    tril = jnp.tril(jnp.ones((T, T), dtype=bool))
    for h in range(H):
        q = x @ wq[h]
        k = x @ wk[h]
        v = x @ wv[h]
        s = (q @ jnp.swapaxes(k, -2, -1)) * C ** (-0.5)
        s = jnp.where(tril, s, -jnp.inf)
        a = jax.nn.softmax(s, axis=-1)
        outs.append(a @ v)
    return jnp.concatenate(outs, axis=-1)


if __name__ == "__main__":
    # Small shapes consistent with the module's forward.
    B, T = 2, 8
    n_embd = 32
    head_size = 8
    num_heads = 4
    context_length = 8  # T <= context_length

    key = jax.random.PRNGKey(0)
    kx, kq, kk, kv = jax.random.split(key, 4)

    x = jax.random.normal(kx, (B, T, n_embd), dtype=jnp.float32)
    # nn.Linear(n_embd, head_size, bias=False) weight is (head_size, n_embd);
    # we store the transposed (n_embd, head_size) version per head, stacked over heads.
    wq = jax.random.normal(kq, (num_heads, n_embd, head_size), dtype=jnp.float32) * 0.1
    wk = jax.random.normal(kk, (num_heads, n_embd, head_size), dtype=jnp.float32) * 0.1
    wv = jax.random.normal(kv, (num_heads, n_embd, head_size), dtype=jnp.float32) * 0.1

    out = multi_head_attention(x, wq, wk, wv)
    out = jax.block_until_ready(out)

    ref = _reference(x, wq, wk, wv)
    assert out.shape == (B, T, num_heads * head_size)
    # Tolerance accounts for the approx-reciprocal softmax denominator.
    assert jnp.allclose(out, ref, atol=1e-2, rtol=1e-2), "mismatch vs reference"

    print("KERNEL_OK")
</pallas_src>

<mosaic_0001>
module attributes {stable_mosaic.version = 11 : i64} {
  func.func @_mha_kernel(%arg0: i32, %arg1: i32, %arg2: memref<1x8x32xf32, #tpu.memory_space<vmem>>, %arg3: memref<1x8x32xf32, #tpu.memory_space<vmem>>, %arg4: memref<32x32xf32, #tpu.memory_space<vmem>>, %arg5: memref<32x32xf32, #tpu.memory_space<vmem>>, %arg6: memref<32x32xf32, #tpu.memory_space<vmem>>, %arg7: memref<1x8x32xf32, #tpu.memory_space<vmem>>) attributes {dimension_semantics = [#tpu.dimension_semantics<parallel>, #tpu.dimension_semantics<parallel>], iteration_bounds = array<i64: 2, 1>, scalar_prefetch = 0 : i64, scratch_operands = 0 : i64, tpu.core_type = #tpu.core_type<tc>, window_params = [{transform_indices = @transform_0, window_bounds = array<i64: 1, 8, 32>}, {transform_indices = @transform_1, window_bounds = array<i64: 1, 8, 32>}, {pipeline_mode = #tpu.pipeline_mode<synchronous>, transform_indices = @transform_2, window_bounds = array<i64: 32, 32>}, {pipeline_mode = #tpu.pipeline_mode<synchronous>, transform_indices = @transform_3, window_bounds = array<i64: 32, 32>}, {pipeline_mode = #tpu.pipeline_mode<synchronous>, transform_indices = @transform_4, window_bounds = array<i64: 32, 32>}, {transform_indices = @transform_5, window_bounds = array<i64: 1, 8, 32>}]} {
    %c0 = arith.constant 0 : index
    %c0_0 = arith.constant 0 : index
    %c0_1 = arith.constant 0 : index
    %0 = vector.load %arg2[%c0, %c0_0, %c0_1] : memref<1x8x32xf32, #tpu.memory_space<vmem>>, vector<1x8x32xf32>
    %1 = vector.shape_cast %0 : vector<1x8x32xf32> to vector<8x32xf32>
    %c0_2 = arith.constant 0 : index
    %c0_3 = arith.constant 0 : index
    %c0_4 = arith.constant 0 : index
    %2 = vector.load %arg3[%c0_2, %c0_3, %c0_4] : memref<1x8x32xf32, #tpu.memory_space<vmem>>, vector<1x8x32xf32>
    %3 = vector.shape_cast %2 : vector<1x8x32xf32> to vector<8x32xf32>
    %c0_5 = arith.constant 0 : index
    %c0_6 = arith.constant 0 : index
    %4 = vector.load %arg4[%c0_5, %c0_6] : memref<32x32xf32, #tpu.memory_space<vmem>>, vector<32x32xf32>
    %cst = arith.constant dense<0.000000e+00> : vector<8x32xf32>
    %5 = tpu.matmul %1, %4, %cst {dimension_numbers = #tpu.dot_dimension_numbers<[1], [0], [0], [1], [0, 0, 1, 1], [], []>} : vector<8x32xf32>, vector<32x32xf32>, vector<8x32xf32> -> vector<8x32xf32>
    %c0_7 = arith.constant 0 : index
    %c0_8 = arith.constant 0 : index
    %6 = vector.load %arg5[%c0_7, %c0_8] : memref<32x32xf32, #tpu.memory_space<vmem>>, vector<32x32xf32>
    %cst_9 = arith.constant dense<0.000000e+00> : vector<8x32xf32>
    %7 = tpu.matmul %3, %6, %cst_9 {dimension_numbers = #tpu.dot_dimension_numbers<[1], [0], [0], [1], [0, 0, 1, 1], [], []>} : vector<8x32xf32>, vector<32x32xf32>, vector<8x32xf32> -> vector<8x32xf32>
    %c0_10 = arith.constant 0 : index
    %c0_11 = arith.constant 0 : index
    %8 = vector.load %arg6[%c0_10, %c0_11] : memref<32x32xf32, #tpu.memory_space<vmem>>, vector<32x32xf32>
    %cst_12 = arith.constant dense<0.000000e+00> : vector<8x32xf32>
    %9 = tpu.matmul %3, %8, %cst_12 {dimension_numbers = #tpu.dot_dimension_numbers<[1], [0], [0], [1], [0, 0, 1, 1], [], []>} : vector<8x32xf32>, vector<32x32xf32>, vector<8x32xf32> -> vector<8x32xf32>
    %10 = vector.shape_cast %5 : vector<8x32xf32> to vector<8x4x8xf32>
    %11 = tpu.transpose %10, [1, 0, 2] : vector<8x4x8xf32> -> vector<4x8x8xf32>
    %12 = vector.shape_cast %7 : vector<8x32xf32> to vector<8x4x8xf32>
    %13 = tpu.transpose %12, [1, 0, 2] : vector<8x4x8xf32> -> vector<4x8x8xf32>
    %14 = vector.shape_cast %9 : vector<8x32xf32> to vector<8x4x8xf32>
    %15 = tpu.transpose %14, [1, 0, 2] : vector<8x4x8xf32> -> vector<4x8x8xf32>
    "tpu.trace_start"() <{level = 10 : i32, message = "hqd,hkd->hqk"}> : () -> ()
    %cst_13 = arith.constant dense<0.000000e+00> : vector<4x8x8xf32>
    %16 = tpu.matmul %11, %13, %cst_13 {dimension_numbers = #tpu.dot_dimension_numbers<[2], [2], [1], [1], [0, 0, 0, 1, 1, 1], [0], [0]>} : vector<4x8x8xf32>, vector<4x8x8xf32>, vector<4x8x8xf32> -> vector<4x8x8xf32>
    "tpu.trace_stop"() : () -> ()
    %c8_i32 = arith.constant 8 : i32
    %17 = arith.muli %arg1, %c8_i32 : i32
    %18 = tpu.iota {dimensions = array<i32: 0>} : vector<8x8xi32>
    %19 = vector.broadcast %17 : i32 to vector<8x8xi32>
    %20 = arith.addi %19, %18 : vector<8x8xi32>
    %21 = tpu.iota {dimensions = array<i32: 1>} : vector<8x8xi32>
    %22 = arith.cmpi sle, %21, %20 : vector<8x8xi32>
    %23 = vector.shape_cast %22 : vector<8x8xi1> to vector<1x8x8xi1>
    %cst_14 = arith.constant 0xFF800000 : f32
    %24 = vector.shape_cast %23 : vector<1x8x8xi1> to vector<1x8x8xi1>
    %25 = vector.broadcast %24 : vector<1x8x8xi1> to vector<4x8x8xi1>
    %26 = vector.broadcast %cst_14 : f32 to vector<4x8x8xf32>
    %27 = arith.select %25, %16, %26 : vector<4x8x8xi1>, vector<4x8x8xf32>
    %cst_15 = arith.constant dense<0xFF800000> : vector<4x8xf32>
    %28 = vector.multi_reduction <maximumf>, %27, %cst_15 [2] : vector<4x8x8xf32> to vector<4x8xf32>
    %29 = vector.shape_cast %28 : vector<4x8xf32> to vector<4x8x1xf32>
    %30 = vector.broadcast %29 : vector<4x8x1xf32> to vector<4x8x8xf32>
    %31 = arith.subf %27, %30 : vector<4x8x8xf32>
    %32 = math.exp %31 : vector<4x8x8xf32>
    %cst_16 = arith.constant dense<0.000000e+00> : vector<4x8xf32>
    %33 = vector.multi_reduction <add>, %32, %cst_16 [2] : vector<4x8x8xf32> to vector<4x8xf32>
    %34 = vector.shape_cast %33 : vector<4x8xf32> to vector<4x8x1xf32>
    %35 = tpu.reciprocal %34 {approx = true} : vector<4x8x1xf32> -> vector<4x8x1xf32>
    %36 = vector.broadcast %35 : vector<4x8x1xf32> to vector<4x8x8xf32>
    %37 = arith.mulf %32, %36 : vector<4x8x8xf32>
    "tpu.trace_start"() <{level = 10 : i32, message = "hqk,hkd->hqd"}> : () -> ()
    %cst_17 = arith.constant dense<0.000000e+00> : vector<4x8x8xf32>
    %38 = tpu.matmul %37, %15, %cst_17 {dimension_numbers = #tpu.dot_dimension_numbers<[2], [1], [1], [2], [0, 0, 0, 1, 1, 2], [0], [0]>} : vector<4x8x8xf32>, vector<4x8x8xf32>, vector<4x8x8xf32> -> vector<4x8x8xf32>
    "tpu.trace_stop"() : () -> ()
    %39 = tpu.transpose %38, [1, 0, 2] : vector<4x8x8xf32> -> vector<8x4x8xf32>
    %40 = vector.shape_cast %39 : vector<8x4x8xf32> to vector<8x32xf32>
    %c0_18 = arith.constant 0 : index
    %c0_19 = arith.constant 0 : index
    %c0_20 = arith.constant 0 : index
    %41 = vector.load %arg7[%c0_18, %c0_19, %c0_20] : memref<1x8x32xf32, #tpu.memory_space<vmem>>, vector<1x8x32xf32>
    %42 = vector.shape_cast %41 : vector<1x8x32xf32> to vector<8x32xf32>
    %43 = vector.shape_cast %40 : vector<8x32xf32> to vector<1x8x32xf32>
    tpu.vector_store %arg7[%c0_18, %c0_19, %c0_20], %43 {strides = array<i32>} : memref<1x8x32xf32, #tpu.memory_space<vmem>>, vector<1x8x32xf32>,
    return
  }
  func.func @transform_0(%arg0: i32, %arg1: i32) -> (i32, i32, i32) {
    %c0_i32 = arith.constant 0 : i32
    %c0_i32_0 = arith.constant 0 : i32
    return %arg0, %arg1, %c0_i32 : i32, i32, i32
  }
  func.func @transform_1(%arg0: i32, %arg1: i32) -> (i32, i32, i32) {
    %c0_i32 = arith.constant 0 : i32
    %c0_i32_0 = arith.constant 0 : i32
    %c0_i32_1 = arith.constant 0 : i32
    return %arg0, %c0_i32, %c0_i32_0 : i32, i32, i32
  }
  func.func @transform_2(%arg0: i32, %arg1: i32) -> (i32, i32) {
    %c0_i32 = arith.constant 0 : i32
    %c0_i32_0 = arith.constant 0 : i32
    %c0_i32_1 = arith.constant 0 : i32
    return %c0_i32, %c0_i32_0 : i32, i32
  }
  func.func @transform_3(%arg0: i32, %arg1: i32) -> (i32, i32) {
    %c0_i32 = arith.constant 0 : i32
    %c0_i32_0 = arith.constant 0 : i32
    %c0_i32_1 = arith.constant 0 : i32
    return %c0_i32, %c0_i32_0 : i32, i32
  }
  func.func @transform_4(%arg0: i32, %arg1: i32) -> (i32, i32) {
    %c0_i32 = arith.constant 0 : i32
    %c0_i32_0 = arith.constant 0 : i32
    %c0_i32_1 = arith.constant 0 : i32
    return %c0_i32, %c0_i32_0 : i32, i32
  }
  func.func @transform_5(%arg0: i32, %arg1: i32) -> (i32, i32, i32) {
    %c0_i32 = arith.constant 0 : i32
    %c0_i32_0 = arith.constant 0 : i32
    return %arg0, %arg1, %c0_i32 : i32, i32, i32
  }
}

</mosaic_0001>

<llo_original>
// kernel: tpu_custom_call.1
$region0: #{tpu_custom_call.1}
  #allocation0 [shape = 'u32[]', space=smem, size = 0x4, offset = 0x4, fixed_abs, tag = 'smem constant byte address 0x4 - core index']
  #allocation1 [shape = 'u32[144,128]{1,0:T(1,128)}', space=vmem, size = 0x12000, scoped, tag = 'internal scratch']
  %s0 = inlined_call_operand.hbm [shape: f32[2,8,32], index: 0, kind: input, shape index: {}]
  %s1 = inlined_call_operand.hbm [shape: f32[2,8,32], index: 1, kind: input, shape index: {}]
  %s2 = inlined_call_operand.hbm [shape: f32[32,32], index: 2, kind: input, shape index: {}]
  %s3 = inlined_call_operand.hbm [shape: f32[32,32], index: 3, kind: input, shape index: {}]
  %s4 = inlined_call_operand.hbm [shape: f32[32,32], index: 4, kind: input, shape index: {}]
  %s5 = inlined_call_operand.hbm [shape: f32[2,8,32], index: 5, kind: output, shape index: {}]
  %s6 = sld [smem:[#allocation0]]
  $region73: #{tpu_custom_call.1} parent=0
    _
  %s8 = ssub.s32 1, %s6
  %s9 = scalar_select 0, %s8, %s6
  $region1: #{tpu_custom_call.1} parent=0
    #allocation2 [shape = 'u8[8192]{0}', space=vmem, size = 0x2000, scoped, tag = 'input window, operand 0']
    #allocation3 [shape = 's32[2]{0}', space=sflag, size = 0x8, scoped, tag = 'scoped memory for tpu_custom_call.1']
    #allocation4 [shape = 's32[2]{0}', space=sflag, size = 0x8, scoped, tag = 'scoped memory for tpu_custom_call.1']
    #allocation5 [shape = 'u8[8192]{0}', space=vmem, size = 0x2000, scoped, tag = 'input window, operand 1']
    #allocation6 [shape = 's32[2]{0}', space=sflag, size = 0x8, scoped, tag = 'scoped memory for tpu_custom_call.1']
    #allocation7 [shape = 'u8[16384]{0}', space=vmem, size = 0x4000, scoped, tag = 'input window, operand 2, single buffered']
    #allocation8 [shape = 'u8[16384]{0}', space=vmem, size = 0x4000, scoped, tag = 'input window, operand 3, single buffered']
    #allocation9 [shape = 's32[1]{0}', space=sflag, size = 0x4, scoped, tag = 'scoped memory for tpu_custom_call.1']
    #allocation10 [shape = 'u8[16384]{0}', space=vmem, size = 0x4000, scoped, tag = 'input window, operand 4, single buffered']
    #allocation11 [shape = 'u8[8192]{0}', space=vmem, size = 0x2000, scoped, tag = 'output window, operand 0']
    %10 = vsyncpa [#allocation3], 0
    %s11 = scalar_lea.sflag [#allocation3], 1
    %12 = vsyncpa %s11, 0
    %13 = vsyncpa [#allocation6], 0
    %s14 = scalar_lea.sflag [#allocation6], 1
    %15 = vsyncpa %s14, 0
    %16 = vsyncpa [#allocation9], 0
    %17 = vsyncpa [#allocation4], 0
    %s18 = scalar_lea.sflag [#allocation4], 1
    %19 = vsyncpa %s18, 0
    loop: start=0, step=1, limit=4
    $region2: #{tpu_custom_call.1} parent=1 // loop_pre_header
      _
    $region3: #{tpu_custom_call.1} parent=1 // loop_header
      %s21 = sphi 0, %s25
      %p22 = scmp.ge.s32.totalorder %s21, 4
      %s28 = sphi 0, %s40
      %s29 = sphi 0, %s36
      %s30 = sphi 0, %s28
      %s31 = sphi 0, %s29
      %s32 = sphi 0, %s30
      %s33 = sphi 0, %s31
      %s45 = sphi 0, %s47
      %s48 = sphi 0, %s45
      %s49 = sphi 0, %s48
      %s65 = sphi 0, %s49
      %s71 = sphi 0, %s73
      %s74 = sphi 0, %s71
      %s75 = sphi 0, %s74
      %s91 = sphi 0, %s75
      %s95 = sphi 0, %s95
      %s97 = sphi 0, %s95
      %s98 = sphi 0, %s97
      %s112 = sphi 0, %s98
      %s116 = sphi 0, %s116
      %s118 = sphi 0, %s116
      %s119 = sphi 0, %s118
      %s133 = sphi 0, %s119
      %s137 = sphi 0, %s137
      %s139 = sphi 0, %s137
      %s140 = sphi 0, %s139
      %s154 = sphi 0, %s140
      %s162 = sphi 0, %s164
      %s165 = sphi 0, %s162
      %s166 = sphi 0, %s165
      %s182 = sphi 0, %s166
    $region4: #{tpu_custom_call.1} parent=1 // loop_header_branch
      %24 = sbr.rel (%p22) target = $region8
    $region5: #{tpu_custom_call.1} parent=1 // loop_body
      %s26 = ssub.s32 %s21, 1
      %s27 = ssub.s32 %s21, 2
      %s34 = sadd.s32 1, %s29
      %p35 = scmp.ge.s32.totalorder %s34, 1
      %s36 = scalar_select %p35, 0, %s34
      %s37 = sadd.s32 1, %s28
      %s38 = scalar_select %p35, %s37, %s28
      %p39 = scmp.ge.s32.totalorder %s38, 2
      %s40 = scalar_select %p39, 0, %s38
      %s41 = ssub.s32 %s28, %s40
      %s42 = ssub.s32 %s29, %s36
      %s43 = sor.u32 %s41, %s42
      %p44 = scmp.eq.s32.totalorder %s43, 0
      %s46 = sadd.s32 %s45, 1
      %s47 = scalar_select %p44, %s45, %s46
      %p50 = pneg %p44
      %p51 = scmp.eq.s32.totalorder %s21, 1
      %p52 = por %p50, %p51
      %p53 = scmp.ne.s32.totalorder %s45, %s48
      %p54 = scmp.eq.s32.totalorder %s21, 0
      %p55 = por %p53, %p54
      %p56 = scmp.ne.s32.totalorder %s45, %s48
      %p57 = scmp.eq.s32.totalorder %s26, 1
      %p58 = por %p56, %p57
      %p59 = scmp.ne.s32.totalorder %s48, %s49
      %p60 = scmp.eq.s32.totalorder %s26, 0
      %p61 = por %p59, %p60
      %p62 = scmp.ne.s32.totalorder %s48, %s49
      %p63 = scmp.eq.s32.totalorder %s27, 1
      %p64 = por %p62, %p63
      %p66 = scmp.ne.s32.totalorder %s49, %s65
      %p67 = scmp.eq.s32.totalorder %s27, 0
      %p68 = por %p66, %p67
      %s69 = ssub.s32 %s28, %s40
      %p70 = scmp.eq.s32.totalorder %s69, 0
      %s72 = sadd.s32 %s71, 1
      %s73 = scalar_select %p70, %s71, %s72
      %p76 = pneg %p70
      %p77 = scmp.eq.s32.totalorder %s21, 1
      %p78 = por %p76, %p77
      %p79 = scmp.ne.s32.totalorder %s71, %s74
      %p80 = scmp.eq.s32.totalorder %s21, 0
      %p81 = por %p79, %p80
      %p82 = scmp.ne.s32.totalorder %s71, %s74
      %p83 = scmp.eq.s32.totalorder %s26, 1
      %p84 = por %p82, %p83
      %p85 = scmp.ne.s32.totalorder %s74, %s75
      %p86 = scmp.eq.s32.totalorder %s26, 0
      %p87 = por %p85, %p86
      %p88 = scmp.ne.s32.totalorder %s74, %s75
      %p89 = scmp.eq.s32.totalorder %s27, 1
      %p90 = por %p88, %p89
      %p92 = scmp.ne.s32.totalorder %s75, %s91
      %p93 = scmp.eq.s32.totalorder %s27, 0
      %p94 = por %p92, %p93
      %s96 = sadd.s32 %s95, 1
      %p99 = scmp.eq.s32.totalorder %s21, 1
      %p100 = scmp.ne.s32.totalorder %s95, %s97
      %p101 = scmp.eq.s32.totalorder %s21, 0
      %p102 = por %p100, %p101
      %p103 = scmp.ne.s32.totalorder %s95, %s97
      %p104 = scmp.eq.s32.totalorder %s26, 1
      %p105 = por %p103, %p104
      %p106 = scmp.ne.s32.totalorder %s97, %s98
      %p107 = scmp.eq.s32.totalorder %s26, 0
      %p108 = por %p106, %p107
      %p109 = scmp.ne.s32.totalorder %s97, %s98
      %p110 = scmp.eq.s32.totalorder %s27, 1
      %p111 = por %p109, %p110
      %p113 = scmp.ne.s32.totalorder %s98, %s112
      %p114 = scmp.eq.s32.totalorder %s27, 0
      %p115 = por %p113, %p114
      %s117 = sadd.s32 %s116, 1
      %p120 = scmp.eq.s32.totalorder %s21, 1
      %p121 = scmp.ne.s32.totalorder %s116, %s118
      %p122 = scmp.eq.s32.totalorder %s21, 0
      %p123 = por %p121, %p122
      %p124 = scmp.ne.s32.totalorder %s116, %s118
      %p125 = scmp.eq.s32.totalorder %s26, 1
      %p126 = por %p124, %p125
      %p127 = scmp.ne.s32.totalorder %s118, %s119
      %p128 = scmp.eq.s32.totalorder %s26, 0
      %p129 = por %p127, %p128
      %p130 = scmp.ne.s32.totalorder %s118, %s119
      %p131 = scmp.eq.s32.totalorder %s27, 1
      %p132 = por %p130, %p131
      %p134 = scmp.ne.s32.totalorder %s119, %s133
      %p135 = scmp.eq.s32.totalorder %s27, 0
      %p136 = por %p134, %p135
      %s138 = sadd.s32 %s137, 1
      %p141 = scmp.eq.s32.totalorder %s21, 1
      %p142 = scmp.ne.s32.totalorder %s137, %s139
      %p143 = scmp.eq.s32.totalorder %s21, 0
      %p144 = por %p142, %p143
      %p145 = scmp.ne.s32.totalorder %s137, %s139
      %p146 = scmp.eq.s32.totalorder %s26, 1
      %p147 = por %p145, %p146
      %p148 = scmp.ne.s32.totalorder %s139, %s140
      %p149 = scmp.eq.s32.totalorder %s26, 0
      %p150 = por %p148, %p149
      %p151 = scmp.ne.s32.totalorder %s139, %s140
      %p152 = scmp.eq.s32.totalorder %s27, 1
      %p153 = por %p151, %p152
      %p155 = scmp.ne.s32.totalorder %s140, %s154
      %p156 = scmp.eq.s32.totalorder %s27, 0
      %p157 = por %p155, %p156
      %s158 = ssub.s32 %s28, %s40
      %s159 = ssub.s32 %s29, %s36
      %s160 = sor.u32 %s158, %s159
      %p161 = scmp.eq.s32.totalorder %s160, 0
      %s163 = sadd.s32 %s162, 1
      %s164 = scalar_select %p161, %s162, %s163
      %p167 = pneg %p161
      %p168 = scmp.eq.s32.totalorder %s21, 1
      %p169 = por %p167, %p168
      %p170 = scmp.ne.s32.totalorder %s162, %s165
      %p171 = scmp.eq.s32.totalorder %s21, 0
      %p172 = por %p170, %p171
      %p173 = scmp.ne.s32.totalorder %s162, %s165
      %p174 = scmp.eq.s32.totalorder %s26, 1
      %p175 = por %p173, %p174
      %p176 = scmp.ne.s32.totalorder %s165, %s166
      %p177 = scmp.eq.s32.totalorder %s26, 0
      %p178 = por %p176, %p177
      %p179 = scmp.ne.s32.totalorder %s165, %s166
      %p180 = scmp.eq.s32.totalorder %s27, 1
      %p181 = por %p179, %p180
      %p183 = scmp.ne.s32.totalorder %s166, %s182
      %p184 = scmp.eq.s32.totalorder %s27, 0
      %p185 = por %p183, %p184
      %p186 = scmp.le.s32.totalorder 1, %s21
      %p187 = scmp.lt.s32.totalorder %s21, 3
      %p188 = pnand %p186, %p187
      %p189 = pneg %p188
      // Predicated region
      $region9: #{tpu_custom_call.1} parent=5 // pred_check
        _
      $region10: #{tpu_custom_call.1} parent=5 // pred_check_branch
        %191 = sbr.rel (%p188) target = $region12
      $region11: #{tpu_custom_call.1} parent=5 // pred_region
        %s192 = ssub.s32 %s21, 1
        // Predicated region
        $region13: #{tpu_custom_call.1} parent=11 // pred_check
          %p193 = pneg %p108
        $region14: #{tpu_custom_call.1} parent=11 // pred_check_branch
          %195 = sbr.rel (%p193) target = $region16
        $region15: #{tpu_custom_call.1} parent=11 // pred_region
          %s197 = ssub.s32 512, 512
          %198 = vsyncadd [#allocation6], %s197
          %s199 = sshll.u32 [#allocation7], 4
          %s200 = int_to_ptr.vmem [resolvable:$true] %s199
          %205 = dma.hbm_to_vmem [thread:$0]  %s2, 512, %s200, [#allocation6], 128, 128, 8
        $region16: #{tpu_custom_call.1} parent=11 // pred_fallthru
          _
        // Predicated region
        $region17: #{tpu_custom_call.1} parent=11 // pred_check
          %p206 = pneg %p129
        $region18: #{tpu_custom_call.1} parent=11 // pred_check_branch
          %208 = sbr.rel (%p206) target = $region20
        $region19: #{tpu_custom_call.1} parent=11 // pred_region
          %s210 = ssub.s32 512, 512
          %211 = vsyncadd [#allocation9], %s210
          %s212 = sshll.u32 [#allocation8], 4
          %s213 = int_to_ptr.vmem [resolvable:$true] %s212
          %218 = dma.hbm_to_vmem [thread:$0]  %s3, 512, %s213, [#allocation9], 128, 128, 8
        $region20: #{tpu_custom_call.1} parent=11 // pred_fallthru
          _
        // Predicated region
        $region21: #{tpu_custom_call.1} parent=11 // pred_check
          %p219 = pneg %p150
        $region22: #{tpu_custom_call.1} parent=11 // pred_check_branch
          %221 = sbr.rel (%p219) target = $region24
        $region23: #{tpu_custom_call.1} parent=11 // pred_region
          %s223 = ssub.s32 512, 512
          %224 = vsyncadd [#allocation9], %s223
          %s225 = sshll.u32 [#allocation10], 4
          %s226 = int_to_ptr.vmem [resolvable:$true] %s225
          %231 = dma.hbm_to_vmem [thread:$0]  %s4, 512, %s226, [#allocation9], 128, 128, 8
        $region24: #{tpu_custom_call.1} parent=11 // pred_fallthru
          _
      $region12: #{tpu_custom_call.1} parent=5 // pred_fallthru
        _
      %p232 = scmp.lt.s32.totalorder %s21, 2
      // Predicated region
      $region25: #{tpu_custom_call.1} parent=5 // pred_check
        %p233 = pneg %p232
      $region26: #{tpu_custom_call.1} parent=5 // pred_check_branch
        %235 = sbr.rel (%p233) target = $region28
      $region27: #{tpu_custom_call.1} parent=5 // pred_region
        // Predicated region
        $region29: #{tpu_custom_call.1} parent=27 // pred_check
          %p236 = pneg %p55
        $region30: #{tpu_custom_call.1} parent=27 // pred_check_branch
          %238 = sbr.rel (%p236) target = $region32
        $region31: #{tpu_custom_call.1} parent=27 // pred_region
          %s239 = sand.u32 %s45, 1
          %s240 = scalar_lea.sflag [#allocation3], %s239
          %s241 = sand.u32 %s45, 1
          %s242 = smul.addr %s241, 8
          %s243 = scalar_lea.vmem [#allocation2], %s242
          %s245 = ssub.s32 128, 128
          %246 = vsyncadd %s240, %s245
          %s247 = sadd.s32 %s29, %s28
          %s248 = smul.addr %s247, 128
          %s249 = scalar_lea.hbm %s0, %s248
          %s251 = sshll.u32 %s243, 4
          %s252 = int_to_ptr.vmem [resolvable:$true] %s251
          %254 = dma.hbm_to_vmem [thread:$0]  %s249, 128, %s252, %s240
        $region32: #{tpu_custom_call.1} parent=27 // pred_fallthru
          _
        // Predicated region
        $region33: #{tpu_custom_call.1} parent=27 // pred_check
          %p255 = pneg %p81
        $region34: #{tpu_custom_call.1} parent=27 // pred_check_branch
          %257 = sbr.rel (%p255) target = $region36
        $region35: #{tpu_custom_call.1} parent=27 // pred_region
          %s258 = sand.u32 %s21, 1
          %s259 = scalar_lea.sflag [#allocation6], %s258
          %s260 = sand.u32 %s71, 1
          %s261 = smul.addr %s260, 8
          %s262 = scalar_lea.vmem [#allocation5], %s261
          %s264 = ssub.s32 128, 128
          %265 = vsyncadd %s259, %s264
          %s266 = smul.addr %s28, 128
          %s267 = scalar_lea.hbm %s1, %s266
          %s269 = sshll.u32 %s262, 4
          %s270 = int_to_ptr.vmem [resolvable:$true] %s269
          %272 = dma.hbm_to_vmem [thread:$0]  %s267, 128, %s270, %s259
        $region36: #{tpu_custom_call.1} parent=27 // pred_fallthru
          _
      $region28: #{tpu_custom_call.1} parent=5 // pred_fallthru
        _
      %p273 = scmp.le.s32.totalorder 1, %s21
      %p274 = scmp.lt.s32.totalorder %s21, 3
      %p275 = pnand %p273, %p274
      %p276 = pneg %p275
      // Predicated region
      $region37: #{tpu_custom_call.1} parent=5 // pred_check
        _
      $region38: #{tpu_custom_call.1} parent=5 // pred_check_branch
        %278 = sbr.rel (%p275) target = $region40
      $region39: #{tpu_custom_call.1} parent=5 // pred_region
        %s279 = ssub.s32 %s21, 1
        %s280 = sand.u32 %s48, 1
        %s281 = scalar_lea.sflag [#allocation3], %s280
        %s282 = sand.u32 %s48, 1
        %s283 = smul.addr %s282, 8
        %s284 = scalar_lea.vmem [#allocation2], %s283
        // Predicated region
        $region41: #{tpu_custom_call.1} parent=39 // pred_check
          %p285 = pneg %p61
        $region42: #{tpu_custom_call.1} parent=39 // pred_check_branch
          %287 = sbr.rel (%p285) target = $region44
        $region43: #{tpu_custom_call.1} parent=39 // pred_region
          %288 = dma.done %s281, 128
        $region44: #{tpu_custom_call.1} parent=39 // pred_fallthru
          _
        %s289 = sand.u32 %s26, 1
        %s290 = scalar_lea.sflag [#allocation6], %s289
        %s291 = sand.u32 %s74, 1
        %s292 = smul.addr %s291, 8
        %s293 = scalar_lea.vmem [#allocation5], %s292
        // Predicated region
        $region45: #{tpu_custom_call.1} parent=39 // pred_check
          %p294 = pneg %p87
        $region46: #{tpu_custom_call.1} parent=39 // pred_check_branch
          %296 = sbr.rel (%p294) target = $region48
        $region47: #{tpu_custom_call.1} parent=39 // pred_region
          %297 = dma.done %s290, 128
        $region48: #{tpu_custom_call.1} parent=39 // pred_fallthru
          _
        // Predicated region
        $region49: #{tpu_custom_call.1} parent=39 // pred_check
          %p298 = pneg %p108
        $region50: #{tpu_custom_call.1} parent=39 // pred_check_branch
          %300 = sbr.rel (%p298) target = $region52
        $region51: #{tpu_custom_call.1} parent=39 // pred_region
          %301 = dma.done [#allocation6], 512
        $region52: #{tpu_custom_call.1} parent=39 // pred_fallthru
          _
        // Predicated region
        $region53: #{tpu_custom_call.1} parent=39 // pred_check
          %p302 = pneg %p129
        $region54: #{tpu_custom_call.1} parent=39 // pred_check_branch
          %304 = sbr.rel (%p302) target = $region56
        $region55: #{tpu_custom_call.1} parent=39 // pred_region
          %305 = dma.done [#allocation9], 512
        $region56: #{tpu_custom_call.1} parent=39 // pred_fallthru
          _
        // Predicated region
        $region57: #{tpu_custom_call.1} parent=39 // pred_check
          %p306 = pneg %p150
        $region58: #{tpu_custom_call.1} parent=39 // pred_check_branch
          %308 = sbr.rel (%p306) target = $region60
        $region59: #{tpu_custom_call.1} parent=39 // pred_region
          %309 = dma.done [#allocation9], 512
        $region60: #{tpu_custom_call.1} parent=39 // pred_fallthru
          _
        %s310 = sand.u32 %s48, 1
        %s311 = scalar_lea.sflag [#allocation3], %s310
        %s312 = sand.u32 %s48, 1
        %s313 = smul.addr %s312, 8
        %s314 = scalar_lea.vmem [#allocation2], %s313
        %p315 = pneg %p61
        %p316 = pneg %p58
        %s317 = sand.u32 %s26, 1
        %s318 = scalar_lea.sflag [#allocation6], %s317
        %s319 = sand.u32 %s74, 1
        %s320 = smul.addr %s319, 8
        %s321 = scalar_lea.vmem [#allocation5], %s320
        %p322 = pneg %p87
        %p323 = pneg %p84
        %p324 = pneg %p108
        %p325 = pneg %p105
        %p326 = pneg %p129
        %p327 = pneg %p126
        %p328 = pneg %p150
        %p329 = pneg %p147
        %p330 = pneg %p178
        %p331 = pneg %p175
        %s332 = sand.u32 %s165, 1
        %s333 = scalar_lea.sflag [#allocation4], %s332
        %s334 = sand.u32 %s165, 1
        %s335 = smul.addr %s334, 8
        %s336 = scalar_lea.vmem [#allocation11], %s335
        %v337 = vld [vmem:[%s284] sm:$0xff]
        %v338 = vld [vmem:[%s293] sm:$0xff]
        %v339 = vld [vmem:[#allocation7] sm:$0xff]
        %v340 = vld [vmem:[#allocation7 + $0x8] sm:$0xff]
        %v341 = vld [vmem:[#allocation7 + $0x10] sm:$0xff]
        %v342 = vld [vmem:[#allocation7 + $0x18] sm:$0xff]
        %vm343 = vcmask 261120
        %v345 = vsel %vm343, %v337, 0
        %347 = vmatprep.subr.mxu0 0.0
        %348 = vmatpush1.msra.mxu0 %v339
        %349 = vmatprep.subr.mxu0 0.0
        %350 = vmatpush1.msra.mxu0 %v340
        %351 = vmatprep.subr.mxu0 0.0
        %352 = vmatpush1.msra.mxu0 %v341
        %353 = vmatprep.subr.mxu0 0.0
        %354 = vmatpush1.msra.mxu0 %v342
        %355 = vmatprep.subr.mxu0 0.0
        %356 = vmatpush1.msra.mxu0 0.0
        %357 = vmatprep.subr.mxu0 0.0
        %358 = vmatpush1.msra.mxu0 0.0
        %359 = vmatprep.subr.mxu0 0.0
        %360 = vmatpush1.msra.mxu0 0.0
        %361 = vmatprep.subr.mxu0 0.0
        %362 = vmatpush1.msra.mxu0 0.0
        %363 = vmatprep.subr.mxu0 0.0
        %364 = vmatpush1.msra.mxu0 0.0
        %365 = vmatprep.subr.mxu0 0.0
        %366 = vmatpush1.msra.mxu0 0.0
        %367 = vmatprep.subr.mxu0 0.0
        %368 = vmatpush1.msra.mxu0 0.0
        %369 = vmatprep.subr.mxu0 0.0
        %370 = vmatpush1.msra.mxu0 0.0
        %371 = vmatprep.subr.mxu0 0.0
        %372 = vmatpush1.msra.mxu0 0.0
        %373 = vmatprep.subr.mxu0 0.0
        %374 = vmatpush1.msra.mxu0 0.0
        %375 = vmatprep.subr.mxu0 0.0
        %376 = vmatpush1.msra.mxu0 0.0
        %377 = vmatprep.subr.mxu0 0.0
        %378 = vmatpush1.msra.mxu0 0.0
        %379 = vmatprep.subr.mxu0 0.0
        %380 = vmatpush1.msra.mxu0 0.0
        %381 = vmatprep.subr.mxu0 0.0
        %382 = vmatpush1.msra.mxu0 0.0
        %383 = vmatprep.subr.mxu0 0.0
        %384 = vmatpush1.msra.mxu0 0.0
        %385 = vmatprep.subr.mxu0 0.0
        %386 = vmatpush1.msra.mxu0 0.0
        %387 = vmatprep.subr.mxu0 0.0
        %388 = vmatpush1.msra.mxu0 0.0
        %389 = vmatprep.subr.mxu0 0.0
        %390 = vmatpush1.msra.mxu0 0.0
        %391 = vmatprep.subr.mxu0 0.0
        %392 = vmatpush1.msra.mxu0 0.0
        %393 = vmatprep.subr.mxu0 0.0
        %394 = vmatpush1.msra.mxu0 0.0
        %395 = vmatprep.subr.mxu0 0.0
        %396 = vmatpush1.msra.mxu0 0.0
        %397 = vmatprep.subr.mxu0 0.0
        %398 = vmatpush1.msra.mxu0 0.0
        %399 = vmatprep.subr.mxu0 0.0
        %400 = vmatpush1.msra.mxu0 0.0
        %401 = vmatprep.subr.mxu0 0.0
        %402 = vmatpush1.msra.mxu0 0.0
        %403 = vmatprep.subr.mxu0 0.0
        %404 = vmatpush1.msra.mxu0 0.0
        %405 = vmatprep.subr.mxu0 0.0
        %406 = vmatpush1.msra.mxu0 0.0
        %407 = vmatprep.subr.mxu0 0.0
        %408 = vmatpush1.msra.mxu0 0.0
        %409 = vmatprep.subr.mxu0 0.0
        %410 = vmatpush1.msra.mxu0 0.0
        %411 = vmatprep.mubr.f32.mxu0 0.0
        %412 = vmatmul.mubr.f32.gmra.mrb[0].mxu0 %v345
        %v413 = vpop.f32.mrb[0].mxu0
        %v414 = vadd.f32 0.0, %v413
        %v415 = vpop.f32.mrb[0].mxu0
        %416 = vdwg.mxu0
        %v417 = vld [vmem:[#allocation8] sm:$0xff]
        %v418 = vld [vmem:[#allocation8 + $0x8] sm:$0xff]
        %v419 = vld [vmem:[#allocation8 + $0x10] sm:$0xff]
        %v420 = vld [vmem:[#allocation8 + $0x18] sm:$0xff]
        %v422 = vsel %vm343, %v338, 0
        %424 = vmatprep.subr.mxu0 0.0
        %425 = vmatpush1.msra.mxu0 %v417
        %426 = vmatprep.subr.mxu0 0.0
        %427 = vmatpush1.msra.mxu0 %v418
        %428 = vmatprep.subr.mxu0 0.0
        %429 = vmatpush1.msra.mxu0 %v419
        %430 = vmatprep.subr.mxu0 0.0
        %431 = vmatpush1.msra.mxu0 %v420
        %432 = vmatprep.subr.mxu0 0.0
        %433 = vmatpush1.msra.mxu0 0.0
        %434 = vmatprep.subr.mxu0 0.0
        %435 = vmatpush1.msra.mxu0 0.0
        %436 = vmatprep.subr.mxu0 0.0
        %437 = vmatpush1.msra.mxu0 0.0
        %438 = vmatprep.subr.mxu0 0.0
        %439 = vmatpush1.msra.mxu0 0.0
        %440 = vmatprep.subr.mxu0 0.0
        %441 = vmatpush1.msra.mxu0 0.0
        %442 = vmatprep.subr.mxu0 0.0
        %443 = vmatpush1.msra.mxu0 0.0
        %444 = vmatprep.subr.mxu0 0.0
        %445 = vmatpush1.msra.mxu0 0.0
        %446 = vmatprep.subr.mxu0 0.0
        %447 = vmatpush1.msra.mxu0 0.0
        %448 = vmatprep.subr.mxu0 0.0
        %449 = vmatpush1.msra.mxu0 0.0
        %450 = vmatprep.subr.mxu0 0.0
        %451 = vmatpush1.msra.mxu0 0.0
        %452 = vmatprep.subr.mxu0 0.0
        %453 = vmatpush1.msra.mxu0 0.0
        %454 = vmatprep.subr.mxu0 0.0
        %455 = vmatpush1.msra.mxu0 0.0
        %456 = vmatprep.subr.mxu0 0.0
        %457 = vmatpush1.msra.mxu0 0.0
        %458 = vmatprep.subr.mxu0 0.0
        %459 = vmatpush1.msra.mxu0 0.0
        %460 = vmatprep.subr.mxu0 0.0
        %461 = vmatpush1.msra.mxu0 0.0
        %462 = vmatprep.subr.mxu0 0.0
        %463 = vmatpush1.msra.mxu0 0.0
        %464 = vmatprep.subr.mxu0 0.0
        %465 = vmatpush1.msra.mxu0 0.0
        %466 = vmatprep.subr.mxu0 0.0
        %467 = vmatpush1.msra.mxu0 0.0
        %468 = vmatprep.subr.mxu0 0.0
        %469 = vmatpush1.msra.mxu0 0.0
        %470 = vmatprep.subr.mxu0 0.0
        %471 = vmatpush1.msra.mxu0 0.0
        %472 = vmatprep.subr.mxu0 0.0
        %473 = vmatpush1.msra.mxu0 0.0
        %474 = vmatprep.subr.mxu0 0.0
        %475 = vmatpush1.msra.mxu0 0.0
        %476 = vmatprep.subr.mxu0 0.0
        %477 = vmatpush1.msra.mxu0 0.0
        %478 = vmatprep.subr.mxu0 0.0
        %479 = vmatpush1.msra.mxu0 0.0
        %480 = vmatprep.subr.mxu0 0.0
        %481 = vmatpush1.msra.mxu0 0.0
        %482 = vmatprep.subr.mxu0 0.0
        %483 = vmatpush1.msra.mxu0 0.0
        %484 = vmatprep.subr.mxu0 0.0
        %485 = vmatpush1.msra.mxu0 0.0
        %486 = vmatprep.subr.mxu0 0.0
        %487 = vmatpush1.msra.mxu0 0.0
        %488 = vmatprep.mubr.f32.mxu0 0.0
        %489 = vmatmul.mubr.f32.gmra.mrb[0].mxu0 %v422
        %v490 = vpop.f32.mrb[0].mxu0
        %v491 = vadd.f32 0.0, %v490
        %v492 = vpop.f32.mrb[0].mxu0
        %493 = vdwg.mxu0
        %v494 = vld [vmem:[#allocation10] sm:$0xff]
        %v495 = vld [vmem:[#allocation10 + $0x8] sm:$0xff]
        %v496 = vld [vmem:[#allocation10 + $0x10] sm:$0xff]
        %v497 = vld [vmem:[#allocation10 + $0x18] sm:$0xff]
        %498 = vmatprep.subr.mxu0 0.0
        %499 = vmatpush1.msra.mxu0 %v494
        %500 = vmatprep.subr.mxu0 0.0
        %501 = vmatpush1.msra.mxu0 %v495
        %502 = vmatprep.subr.mxu0 0.0
        %503 = vmatpush1.msra.mxu0 %v496
        %504 = vmatprep.subr.mxu0 0.0
        %505 = vmatpush1.msra.mxu0 %v497
        %506 = vmatprep.subr.mxu0 0.0
        %507 = vmatpush1.msra.mxu0 0.0
        %508 = vmatprep.subr.mxu0 0.0
        %509 = vmatpush1.msra.mxu0 0.0
        %510 = vmatprep.subr.mxu0 0.0
        %511 = vmatpush1.msra.mxu0 0.0
        %512 = vmatprep.subr.mxu0 0.0
        %513 = vmatpush1.msra.mxu0 0.0
        %514 = vmatprep.subr.mxu0 0.0
        %515 = vmatpush1.msra.mxu0 0.0
        %516 = vmatprep.subr.mxu0 0.0
        %517 = vmatpush1.msra.mxu0 0.0
        %518 = vmatprep.subr.mxu0 0.0
        %519 = vmatpush1.msra.mxu0 0.0
        %520 = vmatprep.subr.mxu0 0.0
        %521 = vmatpush1.msra.mxu0 0.0
        %522 = vmatprep.subr.mxu0 0.0
        %523 = vmatpush1.msra.mxu0 0.0
        %524 = vmatprep.subr.mxu0 0.0
        %525 = vmatpush1.msra.mxu0 0.0
        %526 = vmatprep.subr.mxu0 0.0
        %527 = vmatpush1.msra.mxu0 0.0
        %528 = vmatprep.subr.mxu0 0.0
        %529 = vmatpush1.msra.mxu0 0.0
        %530 = vmatprep.subr.mxu0 0.0
        %531 = vmatpush1.msra.mxu0 0.0
        %532 = vmatprep.subr.mxu0 0.0
        %533 = vmatpush1.msra.mxu0 0.0
        %534 = vmatprep.subr.mxu0 0.0
        %535 = vmatpush1.msra.mxu0 0.0
        %536 = vmatprep.subr.mxu0 0.0
        %537 = vmatpush1.msra.mxu0 0.0
        %538 = vmatprep.subr.mxu0 0.0
        %539 = vmatpush1.msra.mxu0 0.0
        %540 = vmatprep.subr.mxu0 0.0
        %541 = vmatpush1.msra.mxu0 0.0
        %542 = vmatprep.subr.mxu0 0.0
        %543 = vmatpush1.msra.mxu0 0.0
        %544 = vmatprep.subr.mxu0 0.0
        %545 = vmatpush1.msra.mxu0 0.0
        %546 = vmatprep.subr.mxu0 0.0
        %547 = vmatpush1.msra.mxu0 0.0
        %548 = vmatprep.subr.mxu0 0.0
        %549 = vmatpush1.msra.mxu0 0.0
        %550 = vmatprep.subr.mxu0 0.0
        %551 = vmatpush1.msra.mxu0 0.0
        %552 = vmatprep.subr.mxu0 0.0
        %553 = vmatpush1.msra.mxu0 0.0
        %554 = vmatprep.subr.mxu0 0.0
        %555 = vmatpush1.msra.mxu0 0.0
        %556 = vmatprep.subr.mxu0 0.0
        %557 = vmatpush1.msra.mxu0 0.0
        %558 = vmatprep.subr.mxu0 0.0
        %559 = vmatpush1.msra.mxu0 0.0
        %560 = vmatprep.subr.mxu0 0.0
        %561 = vmatpush1.msra.mxu0 0.0
        %562 = vmatprep.mubr.f32.mxu0 0.0
        %563 = vmatmul.mubr.f32.gmra.mrb[0].mxu0 %v422
        %v564 = vpop.f32.mrb[0].mxu0
        %v565 = vadd.f32 0.0, %v564
        %v566 = vpop.f32.mrb[0].mxu0
        %567 = vdwg.mxu0
        %569 = vrot.lane.b32.xlu0 %v414, 120
        %v570 = vpop.permute.xlu0 %569
        %572 = vrot.lane.b32.xlu0 %v414, 112
        %v573 = vpop.permute.xlu0 %572
        %575 = vrot.lane.b32.xlu0 %v414, 104
        %v576 = vpop.permute.xlu0 %575
        %v578 = vcombine.low %v414, %v573
        %v579 = vcombine.high %v414, %v573
        %v581 = vunpack.c.l.s4 1983009808
        %v582 = vunpack.c.0.s8 %v581
        %v583 = vlaneseq
        %v584 = vshrl.u32 %v583, 7
        %v585 = vsub.s32 %v582, %v584
        %v586 = vrot.slane %v578, %v585
        %v588 = vunpack.c.l.s4 1983009808
        %v589 = vunpack.c.0.s8 %v588
        %v590 = vlaneseq
        %v591 = vshrl.u32 %v590, 7
        %v592 = vsub.s32 %v589, %v591
        %v593 = vrot.slane %v579, %v592
        %v594 = vcombine.low %v570, %v576
        %v595 = vcombine.high %v570, %v576
        %v597 = vunpack.c.l.s4 1983009808
        %v598 = vunpack.c.0.s8 %v597
        %v599 = vlaneseq
        %v600 = vshrl.u32 %v599, 7
        %v601 = vsub.s32 %v598, %v600
        %v602 = vrot.slane %v594, %v601
        %v604 = vunpack.c.l.s4 1983009808
        %v605 = vunpack.c.0.s8 %v604
        %v606 = vlaneseq
        %v607 = vshrl.u32 %v606, 7
        %v608 = vsub.s32 %v605, %v607
        %v609 = vrot.slane %v595, %v608
        %v610 = vcombine.low %v586, %v602
        %v611 = vcombine.high %v586, %v602
        %v613 = vunpack.c.l.s4 1934713408
        %v614 = vunpack.c.0.s8 %v613
        %v615 = vlaneseq
        %v616 = vshrl.u32 %v615, 7
        %v617 = vsub.s32 %v614, %v616
        %v618 = vrot.slane %v610, %v617
        %v620 = vunpack.c.l.s4 1934713408
        %v621 = vunpack.c.0.s8 %v620
        %v622 = vlaneseq
        %v623 = vshrl.u32 %v622, 7
        %v624 = vsub.s32 %v621, %v623
        %v625 = vrot.slane %v611, %v624
        %v626 = vcombine.low %v593, %v609
        %v627 = vcombine.high %v593, %v609
        %v629 = vunpack.c.l.s4 1934713408
        %v630 = vunpack.c.0.s8 %v629
        %v631 = vlaneseq
        %v632 = vshrl.u32 %v631, 7
        %v633 = vsub.s32 %v630, %v632
        %v634 = vrot.slane %v626, %v633
        %v636 = vunpack.c.l.s4 1934713408
        %v637 = vunpack.c.0.s8 %v636
        %v638 = vlaneseq
        %v639 = vshrl.u32 %v638, 7
        %v640 = vsub.s32 %v637, %v639
        %v641 = vrot.slane %v627, %v640
        %v642 = vcombine.high %v618, 0.0
        %v643 = vcombine.high %v625, 0.0
        %v644 = vcombine.high %v634, 0.0
        %v645 = vcombine.high %v641, 0.0
        %v646 = vcombine.low %v618, %v625
        %v648 = vunpack.c.l.s4 1983009808
        %v649 = vunpack.c.0.s8 %v648
        %v650 = vlaneseq
        %v651 = vshrl.u32 %v650, 7
        %v652 = vsub.s32 %v649, %v651
        %v653 = vrot.slane %v646, %v652
        %v654 = vcombine.low %v642, %v643
        %v656 = vunpack.c.l.s4 1983009808
        %v657 = vunpack.c.0.s8 %v656
        %v658 = vlaneseq
        %v659 = vshrl.u32 %v658, 7
        %v660 = vsub.s32 %v657, %v659
        %v661 = vrot.slane %v654, %v660
        %v662 = vcombine.low %v634, %v641
        %v664 = vunpack.c.l.s4 1983009808
        %v665 = vunpack.c.0.s8 %v664
        %v666 = vlaneseq
        %v667 = vshrl.u32 %v666, 7
        %v668 = vsub.s32 %v665, %v667
        %v669 = vrot.slane %v662, %v668
        %v670 = vcombine.low %v644, %v645
        %v672 = vunpack.c.l.s4 1983009808
        %v673 = vunpack.c.0.s8 %v672
        %v674 = vlaneseq
        %v675 = vshrl.u32 %v674, 7
        %v676 = vsub.s32 %v673, %v675
        %v677 = vrot.slane %v670, %v676
        %v678 = vcombine.low %v653, %v661
        %v679 = vcombine.high %v653, %v661
        %v681 = vunpack.c.l.s4 1934713408
        %v682 = vunpack.c.0.s8 %v681
        %v683 = vlaneseq
        %v684 = vshrl.u32 %v683, 7
        %v685 = vsub.s32 %v682, %v684
        %v686 = vrot.slane %v678, %v685
        %v688 = vunpack.c.l.s4 1934713408
        %v689 = vunpack.c.0.s8 %v688
        %v690 = vlaneseq
        %v691 = vshrl.u32 %v690, 7
        %v692 = vsub.s32 %v689, %v691
        %v693 = vrot.slane %v679, %v692
        %v694 = vcombine.low %v669, %v677
        %v695 = vcombine.high %v669, %v677
        %v697 = vunpack.c.l.s4 1934713408
        %v698 = vunpack.c.0.s8 %v697
        %v699 = vlaneseq
        %v700 = vshrl.u32 %v699, 7
        %v701 = vsub.s32 %v698, %v700
        %v702 = vrot.slane %v694, %v701
        %v704 = vunpack.c.l.s4 1934713408
        %v705 = vunpack.c.0.s8 %v704
        %v706 = vlaneseq
        %v707 = vshrl.u32 %v706, 7
        %v708 = vsub.s32 %v705, %v707
        %v709 = vrot.slane %v695, %v708
        %v710 = vcombine.low %v686, %v702
        %v711 = vcombine.high %v686, %v702
        %v712 = vcombine.low %v693, %v709
        %v713 = vcombine.high %v693, %v709
        %715 = vrot.lane.b32.xlu0 %v491, 120
        %v716 = vpop.permute.xlu0 %715
        %718 = vrot.lane.b32.xlu0 %v491, 112
        %v719 = vpop.permute.xlu0 %718
        %721 = vrot.lane.b32.xlu0 %v491, 104
        %v722 = vpop.permute.xlu0 %721
        %v724 = vcombine.low %v491, %v719
        %v725 = vcombine.high %v491, %v719
        %v727 = vunpack.c.l.s4 1983009808
        %v728 = vunpack.c.0.s8 %v727
        %v729 = vlaneseq
        %v730 = vshrl.u32 %v729, 7
        %v731 = vsub.s32 %v728, %v730
        %v732 = vrot.slane %v724, %v731
        %v734 = vunpack.c.l.s4 1983009808
        %v735 = vunpack.c.0.s8 %v734
        %v736 = vlaneseq
        %v737 = vshrl.u32 %v736, 7
        %v738 = vsub.s32 %v735, %v737
        %v739 = vrot.slane %v725, %v738
        %v740 = vcombine.low %v716, %v722
        %v741 = vcombine.high %v716, %v722
        %v743 = vunpack.c.l.s4 1983009808
        %v744 = vunpack.c.0.s8 %v743
        %v745 = vlaneseq
        %v746 = vshrl.u32 %v745, 7
        %v747 = vsub.s32 %v744, %v746
        %v748 = vrot.slane %v740, %v747
        %v750 = vunpack.c.l.s4 1983009808
        %v751 = vunpack.c.0.s8 %v750
        %v752 = vlaneseq
        %v753 = vshrl.u32 %v752, 7
        %v754 = vsub.s32 %v751, %v753
        %v755 = vrot.slane %v741, %v754
        %v756 = vcombine.low %v732, %v748
        %v757 = vcombine.high %v732, %v748
        %v759 = vunpack.c.l.s4 1934713408
        %v760 = vunpack.c.0.s8 %v759
        %v761 = vlaneseq
        %v762 = vshrl.u32 %v761, 7
        %v763 = vsub.s32 %v760, %v762
        %v764 = vrot.slane %v756, %v763
        %v766 = vunpack.c.l.s4 1934713408
        %v767 = vunpack.c.0.s8 %v766
        %v768 = vlaneseq
        %v769 = vshrl.u32 %v768, 7
        %v770 = vsub.s32 %v767, %v769
        %v771 = vrot.slane %v757, %v770
        %v772 = vcombine.low %v739, %v755
        %v773 = vcombine.high %v739, %v755
        %v775 = vunpack.c.l.s4 1934713408
        %v776 = vunpack.c.0.s8 %v775
        %v777 = vlaneseq
        %v778 = vshrl.u32 %v777, 7
        %v779 = vsub.s32 %v776, %v778
        %v780 = vrot.slane %v772, %v779
        %v782 = vunpack.c.l.s4 1934713408
        %v783 = vunpack.c.0.s8 %v782
        %v784 = vlaneseq
        %v785 = vshrl.u32 %v784, 7
        %v786 = vsub.s32 %v783, %v785
        %v787 = vrot.slane %v773, %v786
        %v788 = vcombine.high %v764, 0.0
        %v789 = vcombine.high %v771, 0.0
        %v790 = vcombine.high %v780, 0.0
        %v791 = vcombine.high %v787, 0.0
        %v792 = vcombine.low %v764, %v771
        %v794 = vunpack.c.l.s4 1983009808
        %v795 = vunpack.c.0.s8 %v794
        %v796 = vlaneseq
        %v797 = vshrl.u32 %v796, 7
        %v798 = vsub.s32 %v795, %v797
        %v799 = vrot.slane %v792, %v798
        %v800 = vcombine.low %v788, %v789
        %v802 = vunpack.c.l.s4 1983009808
        %v803 = vunpack.c.0.s8 %v802
        %v804 = vlaneseq
        %v805 = vshrl.u32 %v804, 7
        %v806 = vsub.s32 %v803, %v805
        %v807 = vrot.slane %v800, %v806
        %v808 = vcombine.low %v780, %v787
        %v810 = vunpack.c.l.s4 1983009808
        %v811 = vunpack.c.0.s8 %v810
        %v812 = vlaneseq
        %v813 = vshrl.u32 %v812, 7
        %v814 = vsub.s32 %v811, %v813
        %v815 = vrot.slane %v808, %v814
        %v816 = vcombine.low %v790, %v791
        %v818 = vunpack.c.l.s4 1983009808
        %v819 = vunpack.c.0.s8 %v818
        %v820 = vlaneseq
        %v821 = vshrl.u32 %v820, 7
        %v822 = vsub.s32 %v819, %v821
        %v823 = vrot.slane %v816, %v822
        %v824 = vcombine.low %v799, %v807
        %v825 = vcombine.high %v799, %v807
        %v827 = vunpack.c.l.s4 1934713408
        %v828 = vunpack.c.0.s8 %v827
        %v829 = vlaneseq
        %v830 = vshrl.u32 %v829, 7
        %v831 = vsub.s32 %v828, %v830
        %v832 = vrot.slane %v824, %v831
        %v834 = vunpack.c.l.s4 1934713408
        %v835 = vunpack.c.0.s8 %v834
        %v836 = vlaneseq
        %v837 = vshrl.u32 %v836, 7
        %v838 = vsub.s32 %v835, %v837
        %v839 = vrot.slane %v825, %v838
        %v840 = vcombine.low %v815, %v823
        %v841 = vcombine.high %v815, %v823
        %v843 = vunpack.c.l.s4 1934713408
        %v844 = vunpack.c.0.s8 %v843
        %v845 = vlaneseq
        %v846 = vshrl.u32 %v845, 7
        %v847 = vsub.s32 %v844, %v846
        %v848 = vrot.slane %v840, %v847
        %v850 = vunpack.c.l.s4 1934713408
        %v851 = vunpack.c.0.s8 %v850
        %v852 = vlaneseq
        %v853 = vshrl.u32 %v852, 7
        %v854 = vsub.s32 %v851, %v853
        %v855 = vrot.slane %v841, %v854
        %v856 = vcombine.low %v832, %v848
        %v857 = vcombine.high %v832, %v848
        %v858 = vcombine.low %v839, %v855
        %v859 = vcombine.high %v839, %v855
        %861 = vrot.lane.b32.xlu0 %v565, 120
        %v862 = vpop.permute.xlu0 %861
        %864 = vrot.lane.b32.xlu0 %v565, 112
        %v865 = vpop.permute.xlu0 %864
        %867 = vrot.lane.b32.xlu0 %v565, 104
        %v868 = vpop.permute.xlu0 %867
        %v870 = vcombine.low %v565, %v865
        %v871 = vcombine.high %v565, %v865
        %v873 = vunpack.c.l.s4 1983009808
        %v874 = vunpack.c.0.s8 %v873
        %v875 = vlaneseq
        %v876 = vshrl.u32 %v875, 7
        %v877 = vsub.s32 %v874, %v876
        %v878 = vrot.slane %v870, %v877
        %v880 = vunpack.c.l.s4 1983009808
        %v881 = vunpack.c.0.s8 %v880
        %v882 = vlaneseq
        %v883 = vshrl.u32 %v882, 7
        %v884 = vsub.s32 %v881, %v883
        %v885 = vrot.slane %v871, %v884
        %v886 = vcombine.low %v862, %v868
        %v887 = vcombine.high %v862, %v868
        %v889 = vunpack.c.l.s4 1983009808
        %v890 = vunpack.c.0.s8 %v889
        %v891 = vlaneseq
        %v892 = vshrl.u32 %v891, 7
        %v893 = vsub.s32 %v890, %v892
        %v894 = vrot.slane %v886, %v893
        %v896 = vunpack.c.l.s4 1983009808
        %v897 = vunpack.c.0.s8 %v896
        %v898 = vlaneseq
        %v899 = vshrl.u32 %v898, 7
        %v900 = vsub.s32 %v897, %v899
        %v901 = vrot.slane %v887, %v900
        %v902 = vcombine.low %v878, %v894
        %v903 = vcombine.high %v878, %v894
        %v905 = vunpack.c.l.s4 1934713408
        %v906 = vunpack.c.0.s8 %v905
        %v907 = vlaneseq
        %v908 = vshrl.u32 %v907, 7
        %v909 = vsub.s32 %v906, %v908
        %v910 = vrot.slane %v902, %v909
        %v912 = vunpack.c.l.s4 1934713408
        %v913 = vunpack.c.0.s8 %v912
        %v914 = vlaneseq
        %v915 = vshrl.u32 %v914, 7
        %v916 = vsub.s32 %v913, %v915
        %v917 = vrot.slane %v903, %v916
        %v918 = vcombine.low %v885, %v901
        %v919 = vcombine.high %v885, %v901
        %v921 = vunpack.c.l.s4 1934713408
        %v922 = vunpack.c.0.s8 %v921
        %v923 = vlaneseq
        %v924 = vshrl.u32 %v923, 7
        %v925 = vsub.s32 %v922, %v924
        %v926 = vrot.slane %v918, %v925
        %v928 = vunpack.c.l.s4 1934713408
        %v929 = vunpack.c.0.s8 %v928
        %v930 = vlaneseq
        %v931 = vshrl.u32 %v930, 7
        %v932 = vsub.s32 %v929, %v931
        %v933 = vrot.slane %v919, %v932
        %v934 = vcombine.high %v910, 0.0
        %v935 = vcombine.high %v917, 0.0
        %v936 = vcombine.high %v926, 0.0
        %v937 = vcombine.high %v933, 0.0
        %v938 = vcombine.low %v910, %v917
        %v940 = vunpack.c.l.s4 1983009808
        %v941 = vunpack.c.0.s8 %v940
        %v942 = vlaneseq
        %v943 = vshrl.u32 %v942, 7
        %v944 = vsub.s32 %v941, %v943
        %v945 = vrot.slane %v938, %v944
        %v946 = vcombine.low %v934, %v935
        %v948 = vunpack.c.l.s4 1983009808
        %v949 = vunpack.c.0.s8 %v948
        %v950 = vlaneseq
        %v951 = vshrl.u32 %v950, 7
        %v952 = vsub.s32 %v949, %v951
        %v953 = vrot.slane %v946, %v952
        %v954 = vcombine.low %v926, %v933
        %v956 = vunpack.c.l.s4 1983009808
        %v957 = vunpack.c.0.s8 %v956
        %v958 = vlaneseq
        %v959 = vshrl.u32 %v958, 7
        %v960 = vsub.s32 %v957, %v959
        %v961 = vrot.slane %v954, %v960
        %v962 = vcombine.low %v936, %v937
        %v964 = vunpack.c.l.s4 1983009808
        %v965 = vunpack.c.0.s8 %v964
        %v966 = vlaneseq
        %v967 = vshrl.u32 %v966, 7
        %v968 = vsub.s32 %v965, %v967
        %v969 = vrot.slane %v962, %v968
        %v970 = vcombine.low %v945, %v953
        %v971 = vcombine.high %v945, %v953
        %v973 = vunpack.c.l.s4 1934713408
        %v974 = vunpack.c.0.s8 %v973
        %v975 = vlaneseq
        %v976 = vshrl.u32 %v975, 7
        %v977 = vsub.s32 %v974, %v976
        %v978 = vrot.slane %v970, %v977
        %v980 = vunpack.c.l.s4 1934713408
        %v981 = vunpack.c.0.s8 %v980
        %v982 = vlaneseq
        %v983 = vshrl.u32 %v982, 7
        %v984 = vsub.s32 %v981, %v983
        %v985 = vrot.slane %v971, %v984
        %v986 = vcombine.low %v961, %v969
        %v987 = vcombine.high %v961, %v969
        %v989 = vunpack.c.l.s4 1934713408
        %v990 = vunpack.c.0.s8 %v989
        %v991 = vlaneseq
        %v992 = vshrl.u32 %v991, 7
        %v993 = vsub.s32 %v990, %v992
        %v994 = vrot.slane %v986, %v993
        %v996 = vunpack.c.l.s4 1934713408
        %v997 = vunpack.c.0.s8 %v996
        %v998 = vlaneseq
        %v999 = vshrl.u32 %v998, 7
        %v1000 = vsub.s32 %v997, %v999
        %v1001 = vrot.slane %v987, %v1000
        %v1002 = vcombine.low %v978, %v994
        %v1003 = vcombine.high %v978, %v994
        %v1004 = vcombine.low %v985, %v1001
        %v1005 = vcombine.high %v985, %v1001
        %vm1006 = vcmask 64512
        %v1008 = vsel %vm1006, %v710, 0
        %v1011 = vsel %vm1006, %v856, 0
        %1013 = vmatprep.subr.mxu0 0.0
        %1014 = vmatpush1.xpose.msra.mxu0 %v1011
        %1015 = vmatprep.subr.mxu0 0.0
        %1016 = vmatpush1.xpose.msra.mxu0 0.0
        %1017 = vmatprep.subr.mxu0 0.0
        %1018 = vmatpush1.xpose.msra.mxu0 0.0
        %1019 = vmatprep.subr.mxu0 0.0
        %1020 = vmatpush1.xpose.msra.mxu0 0.0
        %1021 = vmatprep.subr.mxu0 0.0
        %1022 = vmatpush1.xpose.msra.mxu0 0.0
        %1023 = vmatprep.subr.mxu0 0.0
        %1024 = vmatpush1.xpose.msra.mxu0 0.0
        %1025 = vmatprep.subr.mxu0 0.0
        %1026 = vmatpush1.xpose.msra.mxu0 0.0
        %1027 = vmatprep.subr.mxu0 0.0
        %1028 = vmatpush1.xpose.msra.mxu0 0.0
        %1029 = vmatprep.subr.mxu0 0.0
        %1030 = vmatpush1.xpose.msra.mxu0 0.0
        %1031 = vmatprep.subr.mxu0 0.0
        %1032 = vmatpush1.xpose.msra.mxu0 0.0
        %1033 = vmatprep.subr.mxu0 0.0
        %1034 = vmatpush1.xpose.msra.mxu0 0.0
        %1035 = vmatprep.subr.mxu0 0.0
        %1036 = vmatpush1.xpose.msra.mxu0 0.0
        %1037 = vmatprep.subr.mxu0 0.0
        %1038 = vmatpush1.xpose.msra.mxu0 0.0
        %1039 = vmatprep.subr.mxu0 0.0
        %1040 = vmatpush1.xpose.msra.mxu0 0.0
        %1041 = vmatprep.subr.mxu0 0.0
        %1042 = vmatpush1.xpose.msra.mxu0 0.0
        %1043 = vmatprep.subr.mxu0 0.0
        %1044 = vmatpush1.xpose.msra.mxu0 0.0
        %1045 = vmatprep.subr.mxu0 0.0
        %1046 = vmatpush1.xpose.msra.mxu0 0.0
        %1047 = vmatprep.subr.mxu0 0.0
        %1048 = vmatpush1.xpose.msra.mxu0 0.0
        %1049 = vmatprep.subr.mxu0 0.0
        %1050 = vmatpush1.xpose.msra.mxu0 0.0
        %1051 = vmatprep.subr.mxu0 0.0
        %1052 = vmatpush1.xpose.msra.mxu0 0.0
        %1053 = vmatprep.subr.mxu0 0.0
        %1054 = vmatpush1.xpose.msra.mxu0 0.0
        %1055 = vmatprep.subr.mxu0 0.0
        %1056 = vmatpush1.xpose.msra.mxu0 0.0
        %1057 = vmatprep.subr.mxu0 0.0
        %1058 = vmatpush1.xpose.msra.mxu0 0.0
        %1059 = vmatprep.subr.mxu0 0.0
        %1060 = vmatpush1.xpose.msra.mxu0 0.0
        %1061 = vmatprep.subr.mxu0 0.0
        %1062 = vmatpush1.xpose.msra.mxu0 0.0
        %1063 = vmatprep.subr.mxu0 0.0
        %1064 = vmatpush1.xpose.msra.mxu0 0.0
        %1065 = vmatprep.subr.mxu0 0.0
        %1066 = vmatpush1.xpose.msra.mxu0 0.0
        %1067 = vmatprep.subr.mxu0 0.0
        %1068 = vmatpush1.xpose.msra.mxu0 0.0
        %1069 = vmatprep.subr.mxu0 0.0
        %1070 = vmatpush1.xpose.msra.mxu0 0.0
        %1071 = vmatprep.subr.mxu0 0.0
        %1072 = vmatpush1.xpose.msra.mxu0 0.0
        %1073 = vmatprep.subr.mxu0 0.0
        %1074 = vmatpush1.xpose.msra.mxu0 0.0
        %1075 = vmatprep.subr.mxu0 0.0
        %1076 = vmatpush1.xpose.msra.mxu0 0.0
        %1077 = vmatprep.mubr.f32.mxu0 0.0
        %1078 = vmatmul.mubr.f32.gmra.mrb[0].mxu0 %v1008
        %v1079 = vpop.f32.mrb[0].mxu0
        %v1080 = vadd.f32 0.0, %v1079
        %v1081 = vpop.f32.mrb[0].mxu0
        %1082 = vdwg.mxu0
        %v1084 = vsel %vm1006, %v711, 0
        %v1087 = vsel %vm1006, %v857, 0
        %1089 = vmatprep.subr.mxu0 0.0
        %1090 = vmatpush1.xpose.msra.mxu0 %v1087
        %1091 = vmatprep.subr.mxu0 0.0
        %1092 = vmatpush1.xpose.msra.mxu0 0.0
        %1093 = vmatprep.subr.mxu0 0.0
        %1094 = vmatpush1.xpose.msra.mxu0 0.0
        %1095 = vmatprep.subr.mxu0 0.0
        %1096 = vmatpush1.xpose.msra.mxu0 0.0
        %1097 = vmatprep.subr.mxu0 0.0
        %1098 = vmatpush1.xpose.msra.mxu0 0.0
        %1099 = vmatprep.subr.mxu0 0.0
        %1100 = vmatpush1.xpose.msra.mxu0 0.0
        %1101 = vmatprep.subr.mxu0 0.0
        %1102 = vmatpush1.xpose.msra.mxu0 0.0
        %1103 = vmatprep.subr.mxu0 0.0
        %1104 = vmatpush1.xpose.msra.mxu0 0.0
        %1105 = vmatprep.subr.mxu0 0.0
        %1106 = vmatpush1.xpose.msra.mxu0 0.0
        %1107 = vmatprep.subr.mxu0 0.0
        %1108 = vmatpush1.xpose.msra.mxu0 0.0
        %1109 = vmatprep.subr.mxu0 0.0
        %1110 = vmatpush1.xpose.msra.mxu0 0.0
        %1111 = vmatprep.subr.mxu0 0.0
        %1112 = vmatpush1.xpose.msra.mxu0 0.0
        %1113 = vmatprep.subr.mxu0 0.0
        %1114 = vmatpush1.xpose.msra.mxu0 0.0
        %1115 = vmatprep.subr.mxu0 0.0
        %1116 = vmatpush1.xpose.msra.mxu0 0.0
        %1117 = vmatprep.subr.mxu0 0.0
        %1118 = vmatpush1.xpose.msra.mxu0 0.0
        %1119 = vmatprep.subr.mxu0 0.0
        %1120 = vmatpush1.xpose.msra.mxu0 0.0
        %1121 = vmatprep.subr.mxu0 0.0
        %1122 = vmatpush1.xpose.msra.mxu0 0.0
        %1123 = vmatprep.subr.mxu0 0.0
        %1124 = vmatpush1.xpose.msra.mxu0 0.0
        %1125 = vmatprep.subr.mxu0 0.0
        %1126 = vmatpush1.xpose.msra.mxu0 0.0
        %1127 = vmatprep.subr.mxu0 0.0
        %1128 = vmatpush1.xpose.msra.mxu0 0.0
        %1129 = vmatprep.subr.mxu0 0.0
        %1130 = vmatpush1.xpose.msra.mxu0 0.0
        %1131 = vmatprep.subr.mxu0 0.0
        %1132 = vmatpush1.xpose.msra.mxu0 0.0
        %1133 = vmatprep.subr.mxu0 0.0
        %1134 = vmatpush1.xpose.msra.mxu0 0.0
        %1135 = vmatprep.subr.mxu0 0.0
        %1136 = vmatpush1.xpose.msra.mxu0 0.0
        %1137 = vmatprep.subr.mxu0 0.0
        %1138 = vmatpush1.xpose.msra.mxu0 0.0
        %1139 = vmatprep.subr.mxu0 0.0
        %1140 = vmatpush1.xpose.msra.mxu0 0.0
        %1141 = vmatprep.subr.mxu0 0.0
        %1142 = vmatpush1.xpose.msra.mxu0 0.0
        %1143 = vmatprep.subr.mxu0 0.0
        %1144 = vmatpush1.xpose.msra.mxu0 0.0
        %1145 = vmatprep.subr.mxu0 0.0
        %1146 = vmatpush1.xpose.msra.mxu0 0.0
        %1147 = vmatprep.subr.mxu0 0.0
        %1148 = vmatpush1.xpose.msra.mxu0 0.0
        %1149 = vmatprep.subr.mxu0 0.0
        %1150 = vmatpush1.xpose.msra.mxu0 0.0
        %1151 = vmatprep.subr.mxu0 0.0
        %1152 = vmatpush1.xpose.msra.mxu0 0.0
        %1153 = vmatprep.mubr.f32.mxu0 0.0
        %1154 = vmatmul.mubr.f32.gmra.mrb[0].mxu0 %v1084
        %v1155 = vpop.f32.mrb[0].mxu0
        %v1156 = vadd.f32 0.0, %v1155
        %v1157 = vpop.f32.mrb[0].mxu0
        %1158 = vdwg.mxu0
        %v1160 = vsel %vm1006, %v712, 0
        %v1163 = vsel %vm1006, %v858, 0
        %1165 = vmatprep.subr.mxu0 0.0
        %1166 = vmatpush1.xpose.msra.mxu0 %v1163
        %1167 = vmatprep.subr.mxu0 0.0
        %1168 = vmatpush1.xpose.msra.mxu0 0.0
        %1169 = vmatprep.subr.mxu0 0.0
        %1170 = vmatpush1.xpose.msra.mxu0 0.0
        %1171 = vmatprep.subr.mxu0 0.0
        %1172 = vmatpush1.xpose.msra.mxu0 0.0
        %1173 = vmatprep.subr.mxu0 0.0
        %1174 = vmatpush1.xpose.msra.mxu0 0.0
        %1175 = vmatprep.subr.mxu0 0.0
        %1176 = vmatpush1.xpose.msra.mxu0 0.0
        %1177 = vmatprep.subr.mxu0 0.0
        %1178 = vmatpush1.xpose.msra.mxu0 0.0
        %1179 = vmatprep.subr.mxu0 0.0
        %1180 = vmatpush1.xpose.msra.mxu0 0.0
        %1181 = vmatprep.subr.mxu0 0.0
        %1182 = vmatpush1.xpose.msra.mxu0 0.0
        %1183 = vmatprep.subr.mxu0 0.0
        %1184 = vmatpush1.xpose.msra.mxu0 0.0
        %1185 = vmatprep.subr.mxu0 0.0
        %1186 = vmatpush1.xpose.msra.mxu0 0.0
        %1187 = vmatprep.subr.mxu0 0.0
        %1188 = vmatpush1.xpose.msra.mxu0 0.0
        %1189 = vmatprep.subr.mxu0 0.0
        %1190 = vmatpush1.xpose.msra.mxu0 0.0
        %1191 = vmatprep.subr.mxu0 0.0
        %1192 = vmatpush1.xpose.msra.mxu0 0.0
        %1193 = vmatprep.subr.mxu0 0.0
        %1194 = vmatpush1.xpose.msra.mxu0 0.0
        %1195 = vmatprep.subr.mxu0 0.0
        %1196 = vmatpush1.xpose.msra.mxu0 0.0
        %1197 = vmatprep.subr.mxu0 0.0
        %1198 = vmatpush1.xpose.msra.mxu0 0.0
        %1199 = vmatprep.subr.mxu0 0.0
        %1200 = vmatpush1.xpose.msra.mxu0 0.0
        %1201 = vmatprep.subr.mxu0 0.0
        %1202 = vmatpush1.xpose.msra.mxu0 0.0
        %1203 = vmatprep.subr.mxu0 0.0
        %1204 = vmatpush1.xpose.msra.mxu0 0.0
        %1205 = vmatprep.subr.mxu0 0.0
        %1206 = vmatpush1.xpose.msra.mxu0 0.0
        %1207 = vmatprep.subr.mxu0 0.0
        %1208 = vmatpush1.xpose.msra.mxu0 0.0
        %1209 = vmatprep.subr.mxu0 0.0
        %1210 = vmatpush1.xpose.msra.mxu0 0.0
        %1211 = vmatprep.subr.mxu0 0.0
        %1212 = vmatpush1.xpose.msra.mxu0 0.0
        %1213 = vmatprep.subr.mxu0 0.0
        %1214 = vmatpush1.xpose.msra.mxu0 0.0
        %1215 = vmatprep.subr.mxu0 0.0
        %1216 = vmatpush1.xpose.msra.mxu0 0.0
        %1217 = vmatprep.subr.mxu0 0.0
        %1218 = vmatpush1.xpose.msra.mxu0 0.0
        %1219 = vmatprep.subr.mxu0 0.0
        %1220 = vmatpush1.xpose.msra.mxu0 0.0
        %1221 = vmatprep.subr.mxu0 0.0
        %1222 = vmatpush1.xpose.msra.mxu0 0.0
        %1223 = vmatprep.subr.mxu0 0.0
        %1224 = vmatpush1.xpose.msra.mxu0 0.0
        %1225 = vmatprep.subr.mxu0 0.0
        %1226 = vmatpush1.xpose.msra.mxu0 0.0
        %1227 = vmatprep.subr.mxu0 0.0
        %1228 = vmatpush1.xpose.msra.mxu0 0.0
        %1229 = vmatprep.mubr.f32.mxu0 0.0
        %1230 = vmatmul.mubr.f32.gmra.mrb[0].mxu0 %v1160
        %v1231 = vpop.f32.mrb[0].mxu0
        %v1232 = vadd.f32 0.0, %v1231
        %v1233 = vpop.f32.mrb[0].mxu0
        %1234 = vdwg.mxu0
        %v1236 = vsel %vm1006, %v713, 0
        %v1239 = vsel %vm1006, %v859, 0
        %1241 = vmatprep.subr.mxu0 0.0
        %1242 = vmatpush1.xpose.msra.mxu0 %v1239
        %1243 = vmatprep.subr.mxu0 0.0
        %1244 = vmatpush1.xpose.msra.mxu0 0.0
        %1245 = vmatprep.subr.mxu0 0.0
        %1246 = vmatpush1.xpose.msra.mxu0 0.0
        %1247 = vmatprep.subr.mxu0 0.0
        %1248 = vmatpush1.xpose.msra.mxu0 0.0
        %1249 = vmatprep.subr.mxu0 0.0
        %1250 = vmatpush1.xpose.msra.mxu0 0.0
        %1251 = vmatprep.subr.mxu0 0.0
        %1252 = vmatpush1.xpose.msra.mxu0 0.0
        %1253 = vmatprep.subr.mxu0 0.0
        %1254 = vmatpush1.xpose.msra.mxu0 0.0
        %1255 = vmatprep.subr.mxu0 0.0
        %1256 = vmatpush1.xpose.msra.mxu0 0.0
        %1257 = vmatprep.subr.mxu0 0.0
        %1258 = vmatpush1.xpose.msra.mxu0 0.0
        %1259 = vmatprep.subr.mxu0 0.0
        %1260 = vmatpush1.xpose.msra.mxu0 0.0
        %1261 = vmatprep.subr.mxu0 0.0
        %1262 = vmatpush1.xpose.msra.mxu0 0.0
        %1263 = vmatprep.subr.mxu0 0.0
        %1264 = vmatpush1.xpose.msra.mxu0 0.0
        %1265 = vmatprep.subr.mxu0 0.0
        %1266 = vmatpush1.xpose.msra.mxu0 0.0
        %1267 = vmatprep.subr.mxu0 0.0
        %1268 = vmatpush1.xpose.msra.mxu0 0.0
        %1269 = vmatprep.subr.mxu0 0.0
        %1270 = vmatpush1.xpose.msra.mxu0 0.0
        %1271 = vmatprep.subr.mxu0 0.0
        %1272 = vmatpush1.xpose.msra.mxu0 0.0
        %1273 = vmatprep.subr.mxu0 0.0
        %1274 = vmatpush1.xpose.msra.mxu0 0.0
        %1275 = vmatprep.subr.mxu0 0.0
        %1276 = vmatpush1.xpose.msra.mxu0 0.0
        %1277 = vmatprep.subr.mxu0 0.0
        %1278 = vmatpush1.xpose.msra.mxu0 0.0
        %1279 = vmatprep.subr.mxu0 0.0
        %1280 = vmatpush1.xpose.msra.mxu0 0.0
        %1281 = vmatprep.subr.mxu0 0.0
        %1282 = vmatpush1.xpose.msra.mxu0 0.0
        %1283 = vmatprep.subr.mxu0 0.0
        %1284 = vmatpush1.xpose.msra.mxu0 0.0
        %1285 = vmatprep.subr.mxu0 0.0
        %1286 = vmatpush1.xpose.msra.mxu0 0.0
        %1287 = vmatprep.subr.mxu0 0.0
        %1288 = vmatpush1.xpose.msra.mxu0 0.0
        %1289 = vmatprep.subr.mxu0 0.0
        %1290 = vmatpush1.xpose.msra.mxu0 0.0
        %1291 = vmatprep.subr.mxu0 0.0
        %1292 = vmatpush1.xpose.msra.mxu0 0.0
        %1293 = vmatprep.subr.mxu0 0.0
        %1294 = vmatpush1.xpose.msra.mxu0 0.0
        %1295 = vmatprep.subr.mxu0 0.0
        %1296 = vmatpush1.xpose.msra.mxu0 0.0
        %1297 = vmatprep.subr.mxu0 0.0
        %1298 = vmatpush1.xpose.msra.mxu0 0.0
        %1299 = vmatprep.subr.mxu0 0.0
        %1300 = vmatpush1.xpose.msra.mxu0 0.0
        %1301 = vmatprep.subr.mxu0 0.0
        %1302 = vmatpush1.xpose.msra.mxu0 0.0
        %1303 = vmatprep.subr.mxu0 0.0
        %1304 = vmatpush1.xpose.msra.mxu0 0.0
        %1305 = vmatprep.mubr.f32.mxu0 0.0
        %1306 = vmatmul.mubr.f32.gmra.mrb[0].mxu0 %v1236
        %v1307 = vpop.f32.mrb[0].mxu0
        %v1308 = vadd.f32 0.0, %v1307
        %v1309 = vpop.f32.mrb[0].mxu0
        %1310 = vdwg.mxu0
        %s1311 = smul.u32 %s31, 8
        %v1312 = vlaneseq
        %v1313 = vshrl.u32 %v1312, 7
        %v1314 = vstv %s1311
        %v1315 = vadd.s32 %v1314, %v1313
        %v1316 = vlaneseq
        %v1317 = vand.u32 %v1316, 127
        %vm1318 = vcmp.le.s32.totalorder %v1317, %v1315
        %v1319 = vsel %vm1318, 1, 0
        %vm1320 = vcmp.eq.s32.totalorder %v1319, 1
        %v1321 = vsel %vm1320, %v1080, -inf
        %v1322 = vsel %vm1320, %v1156, -inf
        %v1323 = vsel %vm1320, %v1232, -inf
        %v1324 = vsel %vm1320, %v1308, -inf
        %v1325 = vsel %vm1006, %v1321, -inf
        %1326 = vmax.xlane.f32.xlu0 %v1325
        %v1327 = vpop.xlane.xlu0 %1326
        %v1328 = vsel %vm1006, %v1322, -inf
        %1329 = vmax.xlane.f32.xlu0 %v1328
        %v1330 = vpop.xlane.xlu0 %1329
        %v1331 = vsel %vm1006, %v1323, -inf
        %1332 = vmax.xlane.f32.xlu0 %v1331
        %v1333 = vpop.xlane.xlu0 %1332
        %v1334 = vsel %vm1006, %v1324, -inf
        %1335 = vmax.xlane.f32.xlu0 %v1334
        %v1336 = vpop.xlane.xlu0 %1335
        %v1337 = vsub.f32 %v1321, %v1327
        %v1338 = vsub.f32 %v1322, %v1330
        %v1339 = vsub.f32 %v1323, %v1333
        %v1340 = vsub.f32 %v1324, %v1336
        %v1341 = vmul.f32 %v1337, 1.442695
        %v1342 = vpow.pop %v1341
        %v1343 = vmul.f32 %v1338, 1.442695
        %v1344 = vpow.pop %v1343
        %v1345 = vmul.f32 %v1339, 1.442695
        %v1346 = vpow.pop %v1345
        %v1347 = vmul.f32 %v1340, 1.442695
        %v1348 = vpow.pop %v1347
        %v1349 = vsel %vm1006, %v1342, 0.0
        %1350 = vadd.xlane.f32.xlu0 %v1349
        %v1351 = vpop.xlane.xlu0 %1350
        %v1352 = vsel %vm1006, %v1344, 0.0
        %1353 = vadd.xlane.f32.xlu0 %v1352
        %v1354 = vpop.xlane.xlu0 %1353
        %v1355 = vsel %vm1006, %v1346, 0.0
        %1356 = vadd.xlane.f32.xlu0 %v1355
        %v1357 = vpop.xlane.xlu0 %1356
        %v1358 = vsel %vm1006, %v1348, 0.0
        %1359 = vadd.xlane.f32.xlu0 %v1358
        %v1360 = vpop.xlane.xlu0 %1359
        %v1361 = vrcp.pop %v1351
        %v1362 = vrcp.pop %v1354
        %v1363 = vrcp.pop %v1357
        %v1364 = vrcp.pop %v1360
        %v1365 = vmul.f32 %v1342, %v1361
        %v1366 = vmul.f32 %v1344, %v1362
        %v1367 = vmul.f32 %v1346, %v1363
        %v1368 = vmul.f32 %v1348, %v1364
        %v1370 = vsel %vm1006, %v1365, 0
        %1372 = vmatprep.subr.mxu0 0.0
        %1373 = vmatpush1.msra.mxu0 %v1002
        %1374 = vmatprep.subr.mxu0 0.0
        %1375 = vmatpush1.msra.mxu0 0.0
        %1376 = vmatprep.subr.mxu0 0.0
        %1377 = vmatpush1.msra.mxu0 0.0
        %1378 = vmatprep.subr.mxu0 0.0
        %1379 = vmatpush1.msra.mxu0 0.0
        %1380 = vmatprep.subr.mxu0 0.0
        %1381 = vmatpush1.msra.mxu0 0.0
        %1382 = vmatprep.subr.mxu0 0.0
        %1383 = vmatpush1.msra.mxu0 0.0
        %1384 = vmatprep.subr.mxu0 0.0
        %1385 = vmatpush1.msra.mxu0 0.0
        %1386 = vmatprep.subr.mxu0 0.0
        %1387 = vmatpush1.msra.mxu0 0.0
        %1388 = vmatprep.subr.mxu0 0.0
        %1389 = vmatpush1.msra.mxu0 0.0
        %1390 = vmatprep.subr.mxu0 0.0
        %1391 = vmatpush1.msra.mxu0 0.0
        %1392 = vmatprep.subr.mxu0 0.0
        %1393 = vmatpush1.msra.mxu0 0.0
        %1394 = vmatprep.subr.mxu0 0.0
        %1395 = vmatpush1.msra.mxu0 0.0
        %1396 = vmatprep.subr.mxu0 0.0
        %1397 = vmatpush1.msra.mxu0 0.0
        %1398 = vmatprep.subr.mxu0 0.0
        %1399 = vmatpush1.msra.mxu0 0.0
        %1400 = vmatprep.subr.mxu0 0.0
        %1401 = vmatpush1.msra.mxu0 0.0
        %1402 = vmatprep.subr.mxu0 0.0
        %1403 = vmatpush1.msra.mxu0 0.0
        %1404 = vmatprep.subr.mxu0 0.0
        %1405 = vmatpush1.msra.mxu0 0.0
        %1406 = vmatprep.subr.mxu0 0.0
        %1407 = vmatpush1.msra.mxu0 0.0
        %1408 = vmatprep.subr.mxu0 0.0
        %1409 = vmatpush1.msra.mxu0 0.0
        %1410 = vmatprep.subr.mxu0 0.0
        %1411 = vmatpush1.msra.mxu0 0.0
        %1412 = vmatprep.subr.mxu0 0.0
        %1413 = vmatpush1.msra.mxu0 0.0
        %1414 = vmatprep.subr.mxu0 0.0
        %1415 = vmatpush1.msra.mxu0 0.0
        %1416 = vmatprep.subr.mxu0 0.0
        %1417 = vmatpush1.msra.mxu0 0.0
        %1418 = vmatprep.subr.mxu0 0.0
        %1419 = vmatpush1.msra.mxu0 0.0
        %1420 = vmatprep.subr.mxu0 0.0
        %1421 = vmatpush1.msra.mxu0 0.0
        %1422 = vmatprep.subr.mxu0 0.0
        %1423 = vmatpush1.msra.mxu0 0.0
        %1424 = vmatprep.subr.mxu0 0.0
        %1425 = vmatpush1.msra.mxu0 0.0
        %1426 = vmatprep.subr.mxu0 0.0
        %1427 = vmatpush1.msra.mxu0 0.0
        %1428 = vmatprep.subr.mxu0 0.0
        %1429 = vmatpush1.msra.mxu0 0.0
        %1430 = vmatprep.subr.mxu0 0.0
        %1431 = vmatpush1.msra.mxu0 0.0
        %1432 = vmatprep.subr.mxu0 0.0
        %1433 = vmatpush1.msra.mxu0 0.0
        %1434 = vmatprep.subr.mxu0 0.0
        %1435 = vmatpush1.msra.mxu0 0.0
        %1436 = vmatprep.mubr.f32.mxu0 0.0
        %1437 = vmatmul.mubr.f32.gmra.mrb[0].mxu0 %v1370
        %v1438 = vpop.f32.mrb[0].mxu0
        %v1439 = vadd.f32 0.0, %v1438
        %v1440 = vpop.f32.mrb[0].mxu0
        %1441 = vdwg.mxu0
        %v1443 = vsel %vm1006, %v1366, 0
        %1445 = vmatprep.subr.mxu0 0.0
        %1446 = vmatpush1.msra.mxu0 %v1003
        %1447 = vmatprep.subr.mxu0 0.0
        %1448 = vmatpush1.msra.mxu0 0.0
        %1449 = vmatprep.subr.mxu0 0.0
        %1450 = vmatpush1.msra.mxu0 0.0
        %1451 = vmatprep.subr.mxu0 0.0
        %1452 = vmatpush1.msra.mxu0 0.0
        %1453 = vmatprep.subr.mxu0 0.0
        %1454 = vmatpush1.msra.mxu0 0.0
        %1455 = vmatprep.subr.mxu0 0.0
        %1456 = vmatpush1.msra.mxu0 0.0
        %1457 = vmatprep.subr.mxu0 0.0
        %1458 = vmatpush1.msra.mxu0 0.0
        %1459 = vmatprep.subr.mxu0 0.0
        %1460 = vmatpush1.msra.mxu0 0.0
        %1461 = vmatprep.subr.mxu0 0.0
        %1462 = vmatpush1.msra.mxu0 0.0
        %1463 = vmatprep.subr.mxu0 0.0
        %1464 = vmatpush1.msra.mxu0 0.0
        %1465 = vmatprep.subr.mxu0 0.0
        %1466 = vmatpush1.msra.mxu0 0.0
        %1467 = vmatprep.subr.mxu0 0.0
        %1468 = vmatpush1.msra.mxu0 0.0
        %1469 = vmatprep.subr.mxu0 0.0
        %1470 = vmatpush1.msra.mxu0 0.0
        %1471 = vmatprep.subr.mxu0 0.0
        %1472 = vmatpush1.msra.mxu0 0.0
        %1473 = vmatprep.subr.mxu0 0.0
        %1474 = vmatpush1.msra.mxu0 0.0
        %1475 = vmatprep.subr.mxu0 0.0
        %1476 = vmatpush1.msra.mxu0 0.0
        %1477 = vmatprep.subr.mxu0 0.0
        %1478 = vmatpush1.msra.mxu0 0.0
        %1479 = vmatprep.subr.mxu0 0.0
        %1480 = vmatpush1.msra.mxu0 0.0
        %1481 = vmatprep.subr.mxu0 0.0
        %1482 = vmatpush1.msra.mxu0 0.0
        %1483 = vmatprep.subr.mxu0 0.0
        %1484 = vmatpush1.msra.mxu0 0.0
        %1485 = vmatprep.subr.mxu0 0.0
        %1486 = vmatpush1.msra.mxu0 0.0
        %1487 = vmatprep.subr.mxu0 0.0
        %1488 = vmatpush1.msra.mxu0 0.0
        %1489 = vmatprep.subr.mxu0 0.0
        %1490 = vmatpush1.msra.mxu0 0.0
        %1491 = vmatprep.subr.mxu0 0.0
        %1492 = vmatpush1.msra.mxu0 0.0
        %1493 = vmatprep.subr.mxu0 0.0
        %1494 = vmatpush1.msra.mxu0 0.0
        %1495 = vmatprep.subr.mxu0 0.0
        %1496 = vmatpush1.msra.mxu0 0.0
        %1497 = vmatprep.subr.mxu0 0.0
        %1498 = vmatpush1.msra.mxu0 0.0
        %1499 = vmatprep.subr.mxu0 0.0
        %1500 = vmatpush1.msra.mxu0 0.0
        %1501 = vmatprep.subr.mxu0 0.0
        %1502 = vmatpush1.msra.mxu0 0.0
        %1503 = vmatprep.subr.mxu0 0.0
        %1504 = vmatpush1.msra.mxu0 0.0
        %1505 = vmatprep.subr.mxu0 0.0
        %1506 = vmatpush1.msra.mxu0 0.0
        %1507 = vmatprep.subr.mxu0 0.0
        %1508 = vmatpush1.msra.mxu0 0.0
        %1509 = vmatprep.mubr.f32.mxu0 0.0
        %1510 = vmatmul.mubr.f32.gmra.mrb[0].mxu0 %v1443
        %v1511 = vpop.f32.mrb[0].mxu0
        %v1512 = vadd.f32 0.0, %v1511
        %v1513 = vpop.f32.mrb[0].mxu0
        %1514 = vdwg.mxu0
        %v1516 = vsel %vm1006, %v1367, 0
        %1518 = vmatprep.subr.mxu0 0.0
        %1519 = vmatpush1.msra.mxu0 %v1004
        %1520 = vmatprep.subr.mxu0 0.0
        %1521 = vmatpush1.msra.mxu0 0.0
        %1522 = vmatprep.subr.mxu0 0.0
        %1523 = vmatpush1.msra.mxu0 0.0
        %1524 = vmatprep.subr.mxu0 0.0
        %1525 = vmatpush1.msra.mxu0 0.0
        %1526 = vmatprep.subr.mxu0 0.0
        %1527 = vmatpush1.msra.mxu0 0.0
        %1528 = vmatprep.subr.mxu0 0.0
        %1529 = vmatpush1.msra.mxu0 0.0
        %1530 = vmatprep.subr.mxu0 0.0
        %1531 = vmatpush1.msra.mxu0 0.0
        %1532 = vmatprep.subr.mxu0 0.0
        %1533 = vmatpush1.msra.mxu0 0.0
        %1534 = vmatprep.subr.mxu0 0.0
        %1535 = vmatpush1.msra.mxu0 0.0
        %1536 = vmatprep.subr.mxu0 0.0
        %1537 = vmatpush1.msra.mxu0 0.0
        %1538 = vmatprep.subr.mxu0 0.0
        %1539 = vmatpush1.msra.mxu0 0.0
        %1540 = vmatprep.subr.mxu0 0.0
        %1541 = vmatpush1.msra.mxu0 0.0
        %1542 = vmatprep.subr.mxu0 0.0
        %1543 = vmatpush1.msra.mxu0 0.0
        %1544 = vmatprep.subr.mxu0 0.0
        %1545 = vmatpush1.msra.mxu0 0.0
        %1546 = vmatprep.subr.mxu0 0.0
        %1547 = vmatpush1.msra.mxu0 0.0
        %1548 = vmatprep.subr.mxu0 0.0
        %1549 = vmatpush1.msra.mxu0 0.0
        %1550 = vmatprep.subr.mxu0 0.0
        %1551 = vmatpush1.msra.mxu0 0.0
        %1552 = vmatprep.subr.mxu0 0.0
        %1553 = vmatpush1.msra.mxu0 0.0
        %1554 = vmatprep.subr.mxu0 0.0
        %1555 = vmatpush1.msra.mxu0 0.0
        %1556 = vmatprep.subr.mxu0 0.0
        %1557 = vmatpush1.msra.mxu0 0.0
        %1558 = vmatprep.subr.mxu0 0.0
        %1559 = vmatpush1.msra.mxu0 0.0
        %1560 = vmatprep.subr.mxu0 0.0
        %1561 = vmatpush1.msra.mxu0 0.0
        %1562 = vmatprep.subr.mxu0 0.0
        %1563 = vmatpush1.msra.mxu0 0.0
        %1564 = vmatprep.subr.mxu0 0.0
        %1565 = vmatpush1.msra.mxu0 0.0
        %1566 = vmatprep.subr.mxu0 0.0
        %1567 = vmatpush1.msra.mxu0 0.0
        %1568 = vmatprep.subr.mxu0 0.0
        %1569 = vmatpush1.msra.mxu0 0.0
        %1570 = vmatprep.subr.mxu0 0.0
        %1571 = vmatpush1.msra.mxu0 0.0
        %1572 = vmatprep.subr.mxu0 0.0
        %1573 = vmatpush1.msra.mxu0 0.0
        %1574 = vmatprep.subr.mxu0 0.0
        %1575 = vmatpush1.msra.mxu0 0.0
        %1576 = vmatprep.subr.mxu0 0.0
        %1577 = vmatpush1.msra.mxu0 0.0
        %1578 = vmatprep.subr.mxu0 0.0
        %1579 = vmatpush1.msra.mxu0 0.0
        %1580 = vmatprep.subr.mxu0 0.0
        %1581 = vmatpush1.msra.mxu0 0.0
        %1582 = vmatprep.mubr.f32.mxu0 0.0
        %1583 = vmatmul.mubr.f32.gmra.mrb[0].mxu0 %v1516
        %v1584 = vpop.f32.mrb[0].mxu0
        %v1585 = vadd.f32 0.0, %v1584
        %v1586 = vpop.f32.mrb[0].mxu0
        %1587 = vdwg.mxu0
        %v1589 = vsel %vm1006, %v1368, 0
        %1591 = vmatprep.subr.mxu0 0.0
        %1592 = vmatpush1.msra.mxu0 %v1005
        %1593 = vmatprep.subr.mxu0 0.0
        %1594 = vmatpush1.msra.mxu0 0.0
        %1595 = vmatprep.subr.mxu0 0.0
        %1596 = vmatpush1.msra.mxu0 0.0
        %1597 = vmatprep.subr.mxu0 0.0
        %1598 = vmatpush1.msra.mxu0 0.0
        %1599 = vmatprep.subr.mxu0 0.0
        %1600 = vmatpush1.msra.mxu0 0.0
        %1601 = vmatprep.subr.mxu0 0.0
        %1602 = vmatpush1.msra.mxu0 0.0
        %1603 = vmatprep.subr.mxu0 0.0
        %1604 = vmatpush1.msra.mxu0 0.0
        %1605 = vmatprep.subr.mxu0 0.0
        %1606 = vmatpush1.msra.mxu0 0.0
        %1607 = vmatprep.subr.mxu0 0.0
        %1608 = vmatpush1.msra.mxu0 0.0
        %1609 = vmatprep.subr.mxu0 0.0
        %1610 = vmatpush1.msra.mxu0 0.0
        %1611 = vmatprep.subr.mxu0 0.0
        %1612 = vmatpush1.msra.mxu0 0.0
        %1613 = vmatprep.subr.mxu0 0.0
        %1614 = vmatpush1.msra.mxu0 0.0
        %1615 = vmatprep.subr.mxu0 0.0
        %1616 = vmatpush1.msra.mxu0 0.0
        %1617 = vmatprep.subr.mxu0 0.0
        %1618 = vmatpush1.msra.mxu0 0.0
        %1619 = vmatprep.subr.mxu0 0.0
        %1620 = vmatpush1.msra.mxu0 0.0
        %1621 = vmatprep.subr.mxu0 0.0
        %1622 = vmatpush1.msra.mxu0 0.0
        %1623 = vmatprep.subr.mxu0 0.0
        %1624 = vmatpush1.msra.mxu0 0.0
        %1625 = vmatprep.subr.mxu0 0.0
        %1626 = vmatpush1.msra.mxu0 0.0
        %1627 = vmatprep.subr.mxu0 0.0
        %1628 = vmatpush1.msra.mxu0 0.0
        %1629 = vmatprep.subr.mxu0 0.0
        %1630 = vmatpush1.msra.mxu0 0.0
        %1631 = vmatprep.subr.mxu0 0.0
        %1632 = vmatpush1.msra.mxu0 0.0
        %1633 = vmatprep.subr.mxu0 0.0
        %1634 = vmatpush1.msra.mxu0 0.0
        %1635 = vmatprep.subr.mxu0 0.0
        %1636 = vmatpush1.msra.mxu0 0.0
        %1637 = vmatprep.subr.mxu0 0.0
        %1638 = vmatpush1.msra.mxu0 0.0
        %1639 = vmatprep.subr.mxu0 0.0
        %1640 = vmatpush1.msra.mxu0 0.0
        %1641 = vmatprep.subr.mxu0 0.0
        %1642 = vmatpush1.msra.mxu0 0.0
        %1643 = vmatprep.subr.mxu0 0.0
        %1644 = vmatpush1.msra.mxu0 0.0
        %1645 = vmatprep.subr.mxu0 0.0
        %1646 = vmatpush1.msra.mxu0 0.0
        %1647 = vmatprep.subr.mxu0 0.0
        %1648 = vmatpush1.msra.mxu0 0.0
        %1649 = vmatprep.subr.mxu0 0.0
        %1650 = vmatpush1.msra.mxu0 0.0
        %1651 = vmatprep.subr.mxu0 0.0
        %1652 = vmatpush1.msra.mxu0 0.0
        %1653 = vmatprep.subr.mxu0 0.0
        %1654 = vmatpush1.msra.mxu0 0.0
        %1655 = vmatprep.mubr.f32.mxu0 0.0
        %1656 = vmatmul.mubr.f32.gmra.mrb[0].mxu0 %v1589
        %v1657 = vpop.f32.mrb[0].mxu0
        %v1658 = vadd.f32 0.0, %v1657
        %v1659 = vpop.f32.mrb[0].mxu0
        %1660 = vdwg.mxu0
        %v1661 = vcombine.low %v1439, %v1585
        %v1662 = vcombine.high %v1439, %v1585
        %v1664 = vunpack.c.l.s4 1983009808
        %v1665 = vunpack.c.0.s8 %v1664
        %v1666 = vlaneseq
        %v1667 = vshrl.u32 %v1666, 7
        %v1668 = vsub.s32 %v1665, %v1667
        %v1669 = vrot.slane %v1661, %v1668
        %v1671 = vunpack.c.l.s4 1983009808
        %v1672 = vunpack.c.0.s8 %v1671
        %v1673 = vlaneseq
        %v1674 = vshrl.u32 %v1673, 7
        %v1675 = vsub.s32 %v1672, %v1674
        %v1676 = vrot.slane %v1662, %v1675
        %v1677 = vcombine.low %v1512, %v1658
        %v1678 = vcombine.high %v1512, %v1658
        %v1680 = vunpack.c.l.s4 1983009808
        %v1681 = vunpack.c.0.s8 %v1680
        %v1682 = vlaneseq
        %v1683 = vshrl.u32 %v1682, 7
        %v1684 = vsub.s32 %v1681, %v1683
        %v1685 = vrot.slane %v1677, %v1684
        %v1687 = vunpack.c.l.s4 1983009808
        %v1688 = vunpack.c.0.s8 %v1687
        %v1689 = vlaneseq
        %v1690 = vshrl.u32 %v1689, 7
        %v1691 = vsub.s32 %v1688, %v1690
        %v1692 = vrot.slane %v1678, %v1691
        %v1693 = vcombine.low %v1669, %v1685
        %v1694 = vcombine.high %v1669, %v1685
        %v1696 = vunpack.c.l.s4 1934713408
        %v1697 = vunpack.c.0.s8 %v1696
        %v1698 = vlaneseq
        %v1699 = vshrl.u32 %v1698, 7
        %v1700 = vsub.s32 %v1697, %v1699
        %v1701 = vrot.slane %v1693, %v1700
        %v1703 = vunpack.c.l.s4 1934713408
        %v1704 = vunpack.c.0.s8 %v1703
        %v1705 = vlaneseq
        %v1706 = vshrl.u32 %v1705, 7
        %v1707 = vsub.s32 %v1704, %v1706
        %v1708 = vrot.slane %v1694, %v1707
        %v1709 = vcombine.low %v1676, %v1692
        %v1710 = vcombine.high %v1676, %v1692
        %v1712 = vunpack.c.l.s4 1934713408
        %v1713 = vunpack.c.0.s8 %v1712
        %v1714 = vlaneseq
        %v1715 = vshrl.u32 %v1714, 7
        %v1716 = vsub.s32 %v1713, %v1715
        %v1717 = vrot.slane %v1709, %v1716
        %v1719 = vunpack.c.l.s4 1934713408
        %v1720 = vunpack.c.0.s8 %v1719
        %v1721 = vlaneseq
        %v1722 = vshrl.u32 %v1721, 7
        %v1723 = vsub.s32 %v1720, %v1722
        %v1724 = vrot.slane %v1710, %v1723
        %v1725 = vcombine.high %v1701, 0.0
        %v1726 = vcombine.high %v1708, 0.0
        %v1727 = vcombine.high %v1717, 0.0
        %v1728 = vcombine.high %v1724, 0.0
        %v1729 = vcombine.low %v1701, %v1708
        %v1731 = vunpack.c.l.s4 1983009808
        %v1732 = vunpack.c.0.s8 %v1731
        %v1733 = vlaneseq
        %v1734 = vshrl.u32 %v1733, 7
        %v1735 = vsub.s32 %v1732, %v1734
        %v1736 = vrot.slane %v1729, %v1735
        %v1737 = vcombine.low %v1725, %v1726
        %v1739 = vunpack.c.l.s4 1983009808
        %v1740 = vunpack.c.0.s8 %v1739
        %v1741 = vlaneseq
        %v1742 = vshrl.u32 %v1741, 7
        %v1743 = vsub.s32 %v1740, %v1742
        %v1744 = vrot.slane %v1737, %v1743
        %v1745 = vcombine.low %v1717, %v1724
        %v1747 = vunpack.c.l.s4 1983009808
        %v1748 = vunpack.c.0.s8 %v1747
        %v1749 = vlaneseq
        %v1750 = vshrl.u32 %v1749, 7
        %v1751 = vsub.s32 %v1748, %v1750
        %v1752 = vrot.slane %v1745, %v1751
        %v1753 = vcombine.low %v1727, %v1728
        %v1755 = vunpack.c.l.s4 1983009808
        %v1756 = vunpack.c.0.s8 %v1755
        %v1757 = vlaneseq
        %v1758 = vshrl.u32 %v1757, 7
        %v1759 = vsub.s32 %v1756, %v1758
        %v1760 = vrot.slane %v1753, %v1759
        %v1761 = vcombine.low %v1736, %v1744
        %v1762 = vcombine.high %v1736, %v1744
        %v1764 = vunpack.c.l.s4 1934713408
        %v1765 = vunpack.c.0.s8 %v1764
        %v1766 = vlaneseq
        %v1767 = vshrl.u32 %v1766, 7
        %v1768 = vsub.s32 %v1765, %v1767
        %v1769 = vrot.slane %v1761, %v1768
        %v1771 = vunpack.c.l.s4 1934713408
        %v1772 = vunpack.c.0.s8 %v1771
        %v1773 = vlaneseq
        %v1774 = vshrl.u32 %v1773, 7
        %v1775 = vsub.s32 %v1772, %v1774
        %v1776 = vrot.slane %v1762, %v1775
        %v1777 = vcombine.low %v1752, %v1760
        %v1778 = vcombine.high %v1752, %v1760
        %v1780 = vunpack.c.l.s4 1934713408
        %v1781 = vunpack.c.0.s8 %v1780
        %v1782 = vlaneseq
        %v1783 = vshrl.u32 %v1782, 7
        %v1784 = vsub.s32 %v1781, %v1783
        %v1785 = vrot.slane %v1777, %v1784
        %v1787 = vunpack.c.l.s4 1934713408
        %v1788 = vunpack.c.0.s8 %v1787
        %v1789 = vlaneseq
        %v1790 = vshrl.u32 %v1789, 7
        %v1791 = vsub.s32 %v1788, %v1790
        %v1792 = vrot.slane %v1778, %v1791
        %v1793 = vcombine.low %v1769, %v1785
        %v1794 = vcombine.high %v1769, %v1785
        %v1795 = vcombine.low %v1776, %v1792
        %v1796 = vcombine.high %v1776, %v1792
        %1798 = vrot.lane.b32.xlu0 %v1794, 8
        %v1799 = vpop.permute.xlu0 %1798
        %1802 = vrot.lane.b32.xlu0 %v1795, 16
        %v1803 = vpop.permute.xlu0 %1802
        %1806 = vrot.lane.b32.xlu0 %v1796, 24
        %v1807 = vpop.permute.xlu0 %1806
        %v1809 = vsel %vm1006, %v1793, %v1799
        %vm1810 = vcmask 130048
        %v1811 = vsel %vm1810, %v1809, %v1803
        %vm1812 = vcmask 195584
        %v1813 = vsel %vm1812, %v1811, %v1807
        %1814 = vst.msk [vmem:[%s336] sm:$0xff] %vm343, %v1813
        %s1815 = sand.u32 %s165, 1
        %s1816 = scalar_lea.sflag [#allocation4], %s1815
        %s1817 = sand.u32 %s165, 1
        %s1818 = smul.addr %s1817, 8
        %s1819 = scalar_lea.vmem [#allocation11], %s1818
        // Predicated region
        $region61: #{tpu_custom_call.1} parent=39 // pred_check
          %p1820 = pneg %p175
        $region62: #{tpu_custom_call.1} parent=39 // pred_check_branch
          %1822 = sbr.rel (%p1820) target = $region64
        $region63: #{tpu_custom_call.1} parent=39 // pred_region
          %s1824 = ssub.s32 128, 128
          %1825 = vsyncadd %s1816, %s1824
          %s1826 = sadd.s32 %s31, %s30
          %s1827 = smul.addr %s1826, 128
          %s1828 = scalar_lea.hbm %s5, %s1827
          %s1830 = sshll.u32 %s1819, 4
          %s1831 = int_to_ptr.vmem [resolvable:$true] %s1830
          %1833 = dma.vmem_to_hbm [thread:$0]  %s1831, 128, %s1828, %s1816
        $region64: #{tpu_custom_call.1} parent=39 // pred_fallthru
          _
      $region40: #{tpu_custom_call.1} parent=5 // pred_fallthru
        _
      %p1834 = scmp.le.s32.totalorder 2, %s21
      // Predicated region
      $region65: #{tpu_custom_call.1} parent=5 // pred_check
        %p1835 = pneg %p1834
      $region66: #{tpu_custom_call.1} parent=5 // pred_check_branch
        %1837 = sbr.rel (%p1835) target = $region68
      $region67: #{tpu_custom_call.1} parent=5 // pred_region
        %s1838 = ssub.s32 %s21, 2
        // Predicated region
        $region69: #{tpu_custom_call.1} parent=67 // pred_check
          %p1839 = pneg %p181
        $region70: #{tpu_custom_call.1} parent=67 // pred_check_branch
          %1841 = sbr.rel (%p1839) target = $region72
        $region71: #{tpu_custom_call.1} parent=67 // pred_region
          %s1842 = sand.u32 %s166, 1
          %s1843 = scalar_lea.sflag [#allocation4], %s1842
          %s1844 = sand.u32 %s166, 1
          %s1845 = smul.addr %s1844, 8
          %s1846 = scalar_lea.vmem [#allocation11], %s1845
          %1847 = dma.done %s1843, 128
        $region72: #{tpu_custom_call.1} parent=67 // pred_fallthru
          _
      $region68: #{tpu_custom_call.1} parent=5 // pred_fallthru
        _
    $region6: #{tpu_custom_call.1} parent=1 // loop_footer
      %s25 = sadd.s32 1, %s21
    $region7: #{tpu_custom_call.1} parent=1 // loop_footer_branch
      %20 = sbr.rel target = $region3
    $region8: #{tpu_custom_call.1} parent=1 // loop_exit
      _
    %1848 = vsyncpa [#allocation3], 1
    %s1849 = scalar_lea.sflag [#allocation3], 1
    %1850 = vsyncpa %s1849, 1
    %1851 = vsyncpa [#allocation6], 1
    %s1852 = scalar_lea.sflag [#allocation6], 1
    %1853 = vsyncpa %s1852, 1
    %1854 = vsyncpa [#allocation9], 1
    %1855 = vsyncpa [#allocation4], 1
    %s1856 = scalar_lea.sflag [#allocation4], 1
    %1857 = vsyncpa %s1856, 1

</llo_original>
